<compile_context>
chip_gen: v7x
topology: tpu7x:2x2x1
jax: 0.10.0
libtpu: 0.0.40
codegen_flags: <defaults>
</compile_context>

<pallas_src>
import functools

import jax
import jax.numpy as jnp
import numpy as np
from jax import lax
from jax.experimental import pallas as pl
from jax.experimental.pallas import tpu as pltpu


def _conv_track_kernel(x_ref, w_ref, b_ref,              # inputs
                       y_ref, sum_ref, sumsq_ref,        # outputs
                       *, H: int, W: int, KH: int, KW: int):
    xp = x_ref[0]                       # (H+2, W+2, C) bf16, padded sample
    c_in = xp.shape[-1]
    o_pad = w_ref.shape[-1]

    # In-VMEM im2col: nine shifted taps, each a (H*W, C) x (C, Opad) MXU
    # matmul accumulated in f32.
    acc = jnp.zeros((H * W, o_pad), dtype=jnp.float32)
    for ki in range(KH):
        for kj in range(KW):
            tap = xp[ki:ki + H, kj:kj + W, :].reshape(H * W, c_in)
            acc = acc + jnp.dot(tap, w_ref[ki * KW + kj],
                                preferred_element_type=jnp.float32)

    y = acc + b_ref[...]                # (H*W, Opad) + (1, Opad)
    y_ref[0] = y.astype(y_ref.dtype)

    # Per-sample partial BN statistics (per output channel, reduced over H*W);
    # finalized (mean / unbiased var) in the wrapper.
    sum_ref[0] = jnp.sum(y, axis=0, keepdims=True)
    sumsq_ref[0] = jnp.sum(y * y, axis=0, keepdims=True)


def track_layer_conv_forward(x_nchw, weight_ochw, bias_o,
                             running_mean, running_var, momentum=0.1,
                             lane=128):
    """Returns (x1_nchw, new_running_mean, new_running_std)."""
    N, C, H, W = x_nchw.shape
    O, C_w, KH, KW = weight_ochw.shape
    assert C == C_w and KH == 3 and KW == 3
    Hp, Wp = H + KH - 1, W + KW - 1                      # pad=1, stride=1
    Opad = ((O + lane - 1) // lane) * lane               # lane-dense outputs

    # ---- glue: NHWC + spatial zero-pad, bf16 HBM-facing operands ----
    x_nhwc = jnp.transpose(x_nchw, (0, 2, 3, 1))                      # (N,H,W,C)
    xp = jnp.pad(x_nhwc, ((0, 0), (1, 1), (1, 1), (0, 0))).astype(jnp.bfloat16)

    # weight (O,C,KH,KW) -> (KH*KW, C, Opad): w[k][c,o] = weight[o,c,ki,kj]
    w = jnp.transpose(weight_ochw, (2, 3, 1, 0)).reshape(KH * KW, C, O)
    w = jnp.pad(w, ((0, 0), (0, 0), (0, Opad - O))).astype(jnp.bfloat16)
    b = jnp.pad(bias_o, (0, Opad - O)).reshape(1, Opad).astype(jnp.float32)

    kernel = functools.partial(_conv_track_kernel, H=H, W=W, KH=KH, KW=KW)

    y3, psum, psumsq = pl.pallas_call(
        kernel,
        out_shape=(
            jax.ShapeDtypeStruct((N, H * W, Opad), jnp.float32),
            jax.ShapeDtypeStruct((N, 1, Opad), jnp.float32),
            jax.ShapeDtypeStruct((N, 1, Opad), jnp.float32),
        ),
        grid_spec=pltpu.PrefetchScalarGridSpec(
            num_scalar_prefetch=0,
            grid=(N,),
            in_specs=[
                pl.BlockSpec((1, Hp, Wp, C), lambda i: (i, 0, 0, 0)),
                pl.BlockSpec((KH * KW, C, Opad), lambda i: (0, 0, 0)),  # resident
                pl.BlockSpec((1, Opad), lambda i: (0, 0)),              # resident
            ],
            out_specs=[
                pl.BlockSpec((1, H * W, Opad), lambda i: (i, 0, 0)),
                pl.BlockSpec((1, 1, Opad), lambda i: (i, 0, 0)),
                pl.BlockSpec((1, 1, Opad), lambda i: (i, 0, 0)),
            ],
        ),
        compiler_params=pltpu.CompilerParams(
            dimension_semantics=("parallel",),   # per-sample outputs; megacore-friendly
        ),
    )(xp, w, b)

    # ---- glue: finalize BN batch stats from per-sample partials ----
    m_total = N * H * W
    s = jnp.sum(psum[:, 0, :O], axis=0)
    sq = jnp.sum(psumsq[:, 0, :O], axis=0)
    bmean = s / m_total
    bvar = (sq - m_total * bmean * bmean) / (m_total - 1)   # unbiased (PyTorch BN)

    x1 = jnp.transpose(y3.reshape(N, H, W, Opad)[..., :O], (0, 3, 1, 2))
    new_running_mean = (1.0 - momentum) * running_mean + momentum * bmean
    new_running_var = (1.0 - momentum) * running_var + momentum * bvar
    new_running_std = jnp.sqrt(new_running_var)   # get_stats() -> (mean, sqrt(var))
    return x1, new_running_mean, new_running_std


if __name__ == "__main__":
    # Small shapes consistent with a Conv2d-wrapped TrackLayer.
    N, C, H, W = 2, 4, 16, 16
    O, KH, KW = 8, 3, 3

    key = jax.random.PRNGKey(0)
    kx, kw, kb = jax.random.split(key, 3)
    x = jax.random.normal(kx, (N, C, H, W), dtype=jnp.float32)
    weight = jax.random.normal(kw, (O, C, KH, KW), dtype=jnp.float32) * 0.1
    bias = jax.random.normal(kb, (O,), dtype=jnp.float32) * 0.1

    # BatchNorm initial running stats (PyTorch defaults).
    running_mean = jnp.zeros((O,), dtype=jnp.float32)
    running_var = jnp.ones((O,), dtype=jnp.float32)

    x1, new_mean, new_std = track_layer_conv_forward(
        x, weight, bias, running_mean, running_var)
    jax.block_until_ready((x1, new_mean, new_std))

    # Reference conv (plain JAX) with matching bf16-rounded operands.
    x_bf = x.astype(jnp.bfloat16).astype(jnp.float32)
    w_bf = weight.astype(jnp.bfloat16).astype(jnp.float32)
    ref = lax.conv_general_dilated(
        x_bf, w_bf, window_strides=(1, 1), padding=((1, 1), (1, 1)),
        dimension_numbers=("NCHW", "OIHW", "NCHW"),
        precision=lax.Precision.HIGHEST,
    ) + bias.reshape(1, O, 1, 1)
    np.testing.assert_allclose(np.asarray(x1), np.asarray(ref),
                               rtol=1e-3, atol=1e-3)

    # Reference BN running-stat update computed from the kernel's own output.
    bmean_ref = jnp.mean(x1, axis=(0, 2, 3))
    bvar_ref = jnp.var(x1, axis=(0, 2, 3), ddof=1)
    exp_mean = 0.9 * running_mean + 0.1 * bmean_ref
    exp_std = jnp.sqrt(0.9 * running_var + 0.1 * bvar_ref)
    np.testing.assert_allclose(np.asarray(new_mean), np.asarray(exp_mean),
                               rtol=2e-3, atol=2e-3)
    np.testing.assert_allclose(np.asarray(new_std), np.asarray(exp_std),
                               rtol=2e-3, atol=2e-3)

    print("KERNEL_OK")
</pallas_src>

<mosaic_0001>
module attributes {stable_mosaic.version = 11 : i64} {
  func.func @_conv_track_kernel(%arg0: i32, %arg1: memref<1x18x18x4xbf16, #tpu.memory_space<vmem>>, %arg2: memref<9x4x128xbf16, #tpu.memory_space<vmem>>, %arg3: memref<1x128xf32, #tpu.memory_space<vmem>>, %arg4: memref<1x256x128xf32, #tpu.memory_space<vmem>>, %arg5: memref<1x1x128xf32, #tpu.memory_space<vmem>>, %arg6: memref<1x1x128xf32, #tpu.memory_space<vmem>>) attributes {dimension_semantics = [#tpu.dimension_semantics<parallel>], iteration_bounds = array<i64: 2>, scalar_prefetch = 0 : i64, scratch_operands = 0 : i64, tpu.core_type = #tpu.core_type<tc>, window_params = [{transform_indices = @transform_0, window_bounds = array<i64: 1, 18, 18, 4>}, {pipeline_mode = #tpu.pipeline_mode<synchronous>, transform_indices = @transform_1, window_bounds = array<i64: 9, 4, 128>}, {pipeline_mode = #tpu.pipeline_mode<synchronous>, transform_indices = @transform_2, window_bounds = array<i64: 1, 128>}, {transform_indices = @transform_3, window_bounds = array<i64: 1, 256, 128>}, {transform_indices = @transform_4, window_bounds = array<i64: 1, 1, 128>}, {transform_indices = @transform_5, window_bounds = array<i64: 1, 1, 128>}]} {
    %c0 = arith.constant 0 : index
    %c0_0 = arith.constant 0 : index
    %c0_1 = arith.constant 0 : index
    %c0_2 = arith.constant 0 : index
    %0 = vector.load %arg1[%c0, %c0_0, %c0_1, %c0_2] : memref<1x18x18x4xbf16, #tpu.memory_space<vmem>>, vector<1x18x18x4xbf16>
    %1 = vector.shape_cast %0 : vector<1x18x18x4xbf16> to vector<18x18x4xbf16>
    %cst = arith.constant 0.000000e+00 : f32
    %2 = vector.broadcast %cst : f32 to vector<256x128xf32>
    %3 = vector.extract_strided_slice %1 {offsets = [0, 0, 0], sizes = [16, 16, 4], strides = [1, 1, 1]} : vector<18x18x4xbf16> to vector<16x16x4xbf16>
    %4 = vector.shape_cast %3 : vector<16x16x4xbf16> to vector<256x4xbf16>
    %c0_3 = arith.constant 0 : index
    %c0_4 = arith.constant 0 : index
    %c0_5 = arith.constant 0 : index
    %5 = vector.load %arg2[%c0_3, %c0_4, %c0_5] : memref<9x4x128xbf16, #tpu.memory_space<vmem>>, vector<1x4x128xbf16>
    %6 = vector.shape_cast %5 : vector<1x4x128xbf16> to vector<4x128xbf16>
    %cst_6 = arith.constant dense<0.000000e+00> : vector<256x128xf32>
    %7 = tpu.matmul %4, %6, %cst_6 {dimension_numbers = #tpu.dot_dimension_numbers<[1], [0], [0], [1], [0, 0, 1, 1], [], []>} : vector<256x4xbf16>, vector<4x128xbf16>, vector<256x128xf32> -> vector<256x128xf32>
    %8 = arith.addf %2, %7 : vector<256x128xf32>
    %9 = vector.extract_strided_slice %1 {offsets = [0, 1, 0], sizes = [16, 16, 4], strides = [1, 1, 1]} : vector<18x18x4xbf16> to vector<16x16x4xbf16>
    %10 = vector.shape_cast %9 : vector<16x16x4xbf16> to vector<256x4xbf16>
    %c1 = arith.constant 1 : index
    %c0_7 = arith.constant 0 : index
    %c0_8 = arith.constant 0 : index
    %11 = vector.load %arg2[%c1, %c0_7, %c0_8] : memref<9x4x128xbf16, #tpu.memory_space<vmem>>, vector<1x4x128xbf16>
    %12 = vector.shape_cast %11 : vector<1x4x128xbf16> to vector<4x128xbf16>
    %cst_9 = arith.constant dense<0.000000e+00> : vector<256x128xf32>
    %13 = tpu.matmul %10, %12, %cst_9 {dimension_numbers = #tpu.dot_dimension_numbers<[1], [0], [0], [1], [0, 0, 1, 1], [], []>} : vector<256x4xbf16>, vector<4x128xbf16>, vector<256x128xf32> -> vector<256x128xf32>
    %14 = arith.addf %8, %13 : vector<256x128xf32>
    %15 = vector.extract_strided_slice %1 {offsets = [0, 2, 0], sizes = [16, 16, 4], strides = [1, 1, 1]} : vector<18x18x4xbf16> to vector<16x16x4xbf16>
    %16 = vector.shape_cast %15 : vector<16x16x4xbf16> to vector<256x4xbf16>
    %c2 = arith.constant 2 : index
    %c0_10 = arith.constant 0 : index
    %c0_11 = arith.constant 0 : index
    %17 = vector.load %arg2[%c2, %c0_10, %c0_11] : memref<9x4x128xbf16, #tpu.memory_space<vmem>>, vector<1x4x128xbf16>
    %18 = vector.shape_cast %17 : vector<1x4x128xbf16> to vector<4x128xbf16>
    %cst_12 = arith.constant dense<0.000000e+00> : vector<256x128xf32>
    %19 = tpu.matmul %16, %18, %cst_12 {dimension_numbers = #tpu.dot_dimension_numbers<[1], [0], [0], [1], [0, 0, 1, 1], [], []>} : vector<256x4xbf16>, vector<4x128xbf16>, vector<256x128xf32> -> vector<256x128xf32>
    %20 = arith.addf %14, %19 : vector<256x128xf32>
    %21 = vector.extract_strided_slice %1 {offsets = [1, 0, 0], sizes = [16, 16, 4], strides = [1, 1, 1]} : vector<18x18x4xbf16> to vector<16x16x4xbf16>
    %22 = vector.shape_cast %21 : vector<16x16x4xbf16> to vector<256x4xbf16>
    %c3 = arith.constant 3 : index
    %c0_13 = arith.constant 0 : index
    %c0_14 = arith.constant 0 : index
    %23 = vector.load %arg2[%c3, %c0_13, %c0_14] : memref<9x4x128xbf16, #tpu.memory_space<vmem>>, vector<1x4x128xbf16>
    %24 = vector.shape_cast %23 : vector<1x4x128xbf16> to vector<4x128xbf16>
    %cst_15 = arith.constant dense<0.000000e+00> : vector<256x128xf32>
    %25 = tpu.matmul %22, %24, %cst_15 {dimension_numbers = #tpu.dot_dimension_numbers<[1], [0], [0], [1], [0, 0, 1, 1], [], []>} : vector<256x4xbf16>, vector<4x128xbf16>, vector<256x128xf32> -> vector<256x128xf32>
    %26 = arith.addf %20, %25 : vector<256x128xf32>
    %27 = vector.extract_strided_slice %1 {offsets = [1, 1, 0], sizes = [16, 16, 4], strides = [1, 1, 1]} : vector<18x18x4xbf16> to vector<16x16x4xbf16>
    %28 = vector.shape_cast %27 : vector<16x16x4xbf16> to vector<256x4xbf16>
    %c4 = arith.constant 4 : index
    %c0_16 = arith.constant 0 : index
    %c0_17 = arith.constant 0 : index
    %29 = vector.load %arg2[%c4, %c0_16, %c0_17] : memref<9x4x128xbf16, #tpu.memory_space<vmem>>, vector<1x4x128xbf16>
    %30 = vector.shape_cast %29 : vector<1x4x128xbf16> to vector<4x128xbf16>
    %cst_18 = arith.constant dense<0.000000e+00> : vector<256x128xf32>
    %31 = tpu.matmul %28, %30, %cst_18 {dimension_numbers = #tpu.dot_dimension_numbers<[1], [0], [0], [1], [0, 0, 1, 1], [], []>} : vector<256x4xbf16>, vector<4x128xbf16>, vector<256x128xf32> -> vector<256x128xf32>
    %32 = arith.addf %26, %31 : vector<256x128xf32>
    %33 = vector.extract_strided_slice %1 {offsets = [1, 2, 0], sizes = [16, 16, 4], strides = [1, 1, 1]} : vector<18x18x4xbf16> to vector<16x16x4xbf16>
    %34 = vector.shape_cast %33 : vector<16x16x4xbf16> to vector<256x4xbf16>
    %c5 = arith.constant 5 : index
    %c0_19 = arith.constant 0 : index
    %c0_20 = arith.constant 0 : index
    %35 = vector.load %arg2[%c5, %c0_19, %c0_20] : memref<9x4x128xbf16, #tpu.memory_space<vmem>>, vector<1x4x128xbf16>
    %36 = vector.shape_cast %35 : vector<1x4x128xbf16> to vector<4x128xbf16>
    %cst_21 = arith.constant dense<0.000000e+00> : vector<256x128xf32>
    %37 = tpu.matmul %34, %36, %cst_21 {dimension_numbers = #tpu.dot_dimension_numbers<[1], [0], [0], [1], [0, 0, 1, 1], [], []>} : vector<256x4xbf16>, vector<4x128xbf16>, vector<256x128xf32> -> vector<256x128xf32>
    %38 = arith.addf %32, %37 : vector<256x128xf32>
    %39 = vector.extract_strided_slice %1 {offsets = [2, 0, 0], sizes = [16, 16, 4], strides = [1, 1, 1]} : vector<18x18x4xbf16> to vector<16x16x4xbf16>
    %40 = vector.shape_cast %39 : vector<16x16x4xbf16> to vector<256x4xbf16>
    %c6 = arith.constant 6 : index
    %c0_22 = arith.constant 0 : index
    %c0_23 = arith.constant 0 : index
    %41 = vector.load %arg2[%c6, %c0_22, %c0_23] : memref<9x4x128xbf16, #tpu.memory_space<vmem>>, vector<1x4x128xbf16>
    %42 = vector.shape_cast %41 : vector<1x4x128xbf16> to vector<4x128xbf16>
    %cst_24 = arith.constant dense<0.000000e+00> : vector<256x128xf32>
    %43 = tpu.matmul %40, %42, %cst_24 {dimension_numbers = #tpu.dot_dimension_numbers<[1], [0], [0], [1], [0, 0, 1, 1], [], []>} : vector<256x4xbf16>, vector<4x128xbf16>, vector<256x128xf32> -> vector<256x128xf32>
    %44 = arith.addf %38, %43 : vector<256x128xf32>
    %45 = vector.extract_strided_slice %1 {offsets = [2, 1, 0], sizes = [16, 16, 4], strides = [1, 1, 1]} : vector<18x18x4xbf16> to vector<16x16x4xbf16>
    %46 = vector.shape_cast %45 : vector<16x16x4xbf16> to vector<256x4xbf16>
    %c7 = arith.constant 7 : index
    %c0_25 = arith.constant 0 : index
    %c0_26 = arith.constant 0 : index
    %47 = vector.load %arg2[%c7, %c0_25, %c0_26] : memref<9x4x128xbf16, #tpu.memory_space<vmem>>, vector<1x4x128xbf16>
    %48 = vector.shape_cast %47 : vector<1x4x128xbf16> to vector<4x128xbf16>
    %cst_27 = arith.constant dense<0.000000e+00> : vector<256x128xf32>
    %49 = tpu.matmul %46, %48, %cst_27 {dimension_numbers = #tpu.dot_dimension_numbers<[1], [0], [0], [1], [0, 0, 1, 1], [], []>} : vector<256x4xbf16>, vector<4x128xbf16>, vector<256x128xf32> -> vector<256x128xf32>
    %50 = arith.addf %44, %49 : vector<256x128xf32>
    %51 = vector.extract_strided_slice %1 {offsets = [2, 2, 0], sizes = [16, 16, 4], strides = [1, 1, 1]} : vector<18x18x4xbf16> to vector<16x16x4xbf16>
    %52 = vector.shape_cast %51 : vector<16x16x4xbf16> to vector<256x4xbf16>
    %c8 = arith.constant 8 : index
    %c0_28 = arith.constant 0 : index
    %c0_29 = arith.constant 0 : index
    %53 = vector.load %arg2[%c8, %c0_28, %c0_29] : memref<9x4x128xbf16, #tpu.memory_space<vmem>>, vector<1x4x128xbf16>
    %54 = vector.shape_cast %53 : vector<1x4x128xbf16> to vector<4x128xbf16>
    %cst_30 = arith.constant dense<0.000000e+00> : vector<256x128xf32>
    %55 = tpu.matmul %52, %54, %cst_30 {dimension_numbers = #tpu.dot_dimension_numbers<[1], [0], [0], [1], [0, 0, 1, 1], [], []>} : vector<256x4xbf16>, vector<4x128xbf16>, vector<256x128xf32> -> vector<256x128xf32>
    %56 = arith.addf %50, %55 : vector<256x128xf32>
    %c0_31 = arith.constant 0 : index
    %c0_32 = arith.constant 0 : index
    %57 = vector.load %arg3[%c0_31, %c0_32] : memref<1x128xf32, #tpu.memory_space<vmem>>, vector<1x128xf32>
    %58 = vector.broadcast %57 : vector<1x128xf32> to vector<256x128xf32>
    %59 = arith.addf %56, %58 : vector<256x128xf32>
    %c0_33 = arith.constant 0 : index
    %c0_34 = arith.constant 0 : index
    %c0_35 = arith.constant 0 : index
    %60 = vector.load %arg4[%c0_33, %c0_34, %c0_35] : memref<1x256x128xf32, #tpu.memory_space<vmem>>, vector<1x256x128xf32>
    %61 = vector.shape_cast %60 : vector<1x256x128xf32> to vector<256x128xf32>
    %62 = vector.shape_cast %59 : vector<256x128xf32> to vector<1x256x128xf32>
    tpu.vector_store %arg4[%c0_33, %c0_34, %c0_35], %62 {strides = array<i32>} : memref<1x256x128xf32, #tpu.memory_space<vmem>>, vector<1x256x128xf32>,
    %cst_36 = arith.constant dense<0.000000e+00> : vector<128xf32>
    %63 = vector.multi_reduction <add>, %59, %cst_36 [0] : vector<256x128xf32> to vector<128xf32>
    %64 = vector.shape_cast %63 : vector<128xf32> to vector<1x128xf32>
    %c0_37 = arith.constant 0 : index
    %c0_38 = arith.constant 0 : index
    %c0_39 = arith.constant 0 : index
    %65 = vector.load %arg5[%c0_37, %c0_38, %c0_39] : memref<1x1x128xf32, #tpu.memory_space<vmem>>, vector<1x1x128xf32>
    %66 = vector.shape_cast %65 : vector<1x1x128xf32> to vector<1x128xf32>
    %67 = vector.shape_cast %64 : vector<1x128xf32> to vector<1x1x128xf32>
    tpu.vector_store %arg5[%c0_37, %c0_38, %c0_39], %67 {strides = array<i32>} : memref<1x1x128xf32, #tpu.memory_space<vmem>>, vector<1x1x128xf32>,
    %68 = arith.mulf %59, %59 : vector<256x128xf32>
    %cst_40 = arith.constant dense<0.000000e+00> : vector<128xf32>
    %69 = vector.multi_reduction <add>, %68, %cst_40 [0] : vector<256x128xf32> to vector<128xf32>
    %70 = vector.shape_cast %69 : vector<128xf32> to vector<1x128xf32>
    %c0_41 = arith.constant 0 : index
    %c0_42 = arith.constant 0 : index
    %c0_43 = arith.constant 0 : index
    %71 = vector.load %arg6[%c0_41, %c0_42, %c0_43] : memref<1x1x128xf32, #tpu.memory_space<vmem>>, vector<1x1x128xf32>
    %72 = vector.shape_cast %71 : vector<1x1x128xf32> to vector<1x128xf32>
    %73 = vector.shape_cast %70 : vector<1x128xf32> to vector<1x1x128xf32>
    tpu.vector_store %arg6[%c0_41, %c0_42, %c0_43], %73 {strides = array<i32>} : memref<1x1x128xf32, #tpu.memory_space<vmem>>, vector<1x1x128xf32>,
    return
  }
  func.func @transform_0(%arg0: i32) -> (i32, i32, i32, i32) {
    %c0_i32 = arith.constant 0 : i32
    %c0_i32_0 = arith.constant 0 : i32
    %c0_i32_1 = arith.constant 0 : i32
    %c0_i32_2 = arith.constant 0 : i32
    return %arg0, %c0_i32, %c0_i32_0, %c0_i32_1 : i32, i32, i32, i32
  }
  func.func @transform_1(%arg0: i32) -> (i32, i32, i32) {
    %c0_i32 = arith.constant 0 : i32
    %c0_i32_0 = arith.constant 0 : i32
    %c0_i32_1 = arith.constant 0 : i32
    %c0_i32_2 = arith.constant 0 : i32
    return %c0_i32, %c0_i32_0, %c0_i32_1 : i32, i32, i32
  }
  func.func @transform_2(%arg0: i32) -> (i32, i32) {
    %c0_i32 = arith.constant 0 : i32
    %c0_i32_0 = arith.constant 0 : i32
    %c0_i32_1 = arith.constant 0 : i32
    return %c0_i32, %c0_i32_0 : i32, i32
  }
  func.func @transform_3(%arg0: i32) -> (i32, i32, i32) {
    %c0_i32 = arith.constant 0 : i32
    %c0_i32_0 = arith.constant 0 : i32
    %c0_i32_1 = arith.constant 0 : i32
    return %arg0, %c0_i32, %c0_i32_0 : i32, i32, i32
  }
  func.func @transform_4(%arg0: i32) -> (i32, i32, i32) {
    %c0_i32 = arith.constant 0 : i32
    %c0_i32_0 = arith.constant 0 : i32
    %c0_i32_1 = arith.constant 0 : i32
    return %arg0, %c0_i32, %c0_i32_0 : i32, i32, i32
  }
  func.func @transform_5(%arg0: i32) -> (i32, i32, i32) {
    %c0_i32 = arith.constant 0 : i32
    %c0_i32_0 = arith.constant 0 : i32
    %c0_i32_1 = arith.constant 0 : i32
    return %arg0, %c0_i32, %c0_i32_0 : i32, i32, i32
  }
}

</mosaic_0001>

<llo_original>
// kernel: tpu_custom_call.1
$region0: #{tpu_custom_call.1}
  #allocation0 [shape = 'u32[]', space=smem, size = 0x4, offset = 0x4, fixed_abs, tag = 'smem constant byte address 0x4 - core index']
  #allocation1 [shape = 'u32[144,128]{1,0:T(1,128)}', space=vmem, size = 0x12000, scoped, tag = 'internal scratch']
  %s0 = inlined_call_operand.vmem [shape: bf16[2,18,18,4], index: 0, kind: input, shape index: {}]
  %s1 = inlined_call_operand.vmem [shape: bf16[9,4,128], index: 1, kind: input, shape index: {}]
  %s2 = inlined_call_operand.vmem [shape: f32[1,128], index: 2, kind: input, shape index: {}]
  %s3 = inlined_call_operand.hbm [shape: f32[2,256,128], index: 3, kind: output, shape index: {0}]
  %s4 = inlined_call_operand.hbm [shape: f32[2,1,128], index: 4, kind: output, shape index: {1}]
  %s5 = inlined_call_operand.hbm [shape: f32[2,1,128], index: 5, kind: output, shape index: {2}]
  %6 = xla_tuple %s3, %s4, %s5
  %s7 = sld [smem:[#allocation0]]
  $region61: #{tpu_custom_call.1} parent=0
    _
  %s9 = ssub.s32 1, %s7
  %s10 = scalar_select 0, %s9, %s7
  $region1: #{tpu_custom_call.1} parent=0
    #allocation2 [shape = 'u8[262144]{0}', space=vmem, size = 0x40000, scoped, tag = 'output window, operand 0']
    #allocation3 [shape = 's32[2]{0}', space=sflag, size = 0x8, scoped, tag = 'scoped memory for tpu_custom_call.1']
    #allocation4 [shape = 'u8[1024]{0}', space=vmem, size = 0x400, scoped, tag = 'output window, operand 1']
    #allocation5 [shape = 's32[2]{0}', space=sflag, size = 0x8, scoped, tag = 'scoped memory for tpu_custom_call.1']
    #allocation6 [shape = 'u8[1024]{0}', space=vmem, size = 0x400, scoped, tag = 'output window, operand 2']
    %11 = vsyncpa [#allocation3], 0
    %s12 = scalar_lea.sflag [#allocation3], 1
    %13 = vsyncpa %s12, 0
    %14 = vsyncpa [#allocation5], 0
    %s15 = scalar_lea.sflag [#allocation5], 1
    %16 = vsyncpa %s15, 0
    loop: start=0, step=1, limit=4
    $region2: #{tpu_custom_call.1} parent=1 // loop_pre_header
      _
    $region3: #{tpu_custom_call.1} parent=1 // loop_header
      %s18 = sphi 0, %s22
      %p19 = scmp.ge.s32.totalorder %s18, 4
      %s28 = sphi 0, %s30
      %s31 = sphi 0, %s28
      %s32 = sphi 0, %s31
      %s48 = sphi 0, %s32
      %s52 = sphi 0, %s52
      %s54 = sphi 0, %s52
      %s55 = sphi 0, %s54
      %s69 = sphi 0, %s55
      %s73 = sphi 0, %s73
      %s75 = sphi 0, %s73
      %s76 = sphi 0, %s75
      %s90 = sphi 0, %s76
      %s96 = sphi 0, %s98
      %s99 = sphi 0, %s96
      %s100 = sphi 0, %s99
      %s116 = sphi 0, %s100
      %s122 = sphi 0, %s124
      %s125 = sphi 0, %s122
      %s126 = sphi 0, %s125
      %s142 = sphi 0, %s126
      %s148 = sphi 0, %s150
      %s151 = sphi 0, %s148
      %s152 = sphi 0, %s151
      %s168 = sphi 0, %s152
    $region4: #{tpu_custom_call.1} parent=1 // loop_header_branch
      %21 = sbr.rel (%p19) target = $region8
    $region5: #{tpu_custom_call.1} parent=1 // loop_body
      %s23 = ssub.s32 %s18, 1
      %s24 = ssub.s32 %s18, 2
      %s25 = sadd.s32 %s18, 1
      %s26 = ssub.s32 %s18, %s25
      %p27 = scmp.eq.s32.totalorder %s26, 0
      %s29 = sadd.s32 %s28, 1
      %s30 = scalar_select %p27, %s28, %s29
      %p33 = pneg %p27
      %p34 = scmp.eq.s32.totalorder %s18, 1
      %p35 = por %p33, %p34
      %p36 = scmp.ne.s32.totalorder %s28, %s31
      %p37 = scmp.eq.s32.totalorder %s18, 0
      %p38 = por %p36, %p37
      %p39 = scmp.ne.s32.totalorder %s28, %s31
      %p40 = scmp.eq.s32.totalorder %s23, 1
      %p41 = por %p39, %p40
      %p42 = scmp.ne.s32.totalorder %s31, %s32
      %p43 = scmp.eq.s32.totalorder %s23, 0
      %p44 = por %p42, %p43
      %p45 = scmp.ne.s32.totalorder %s31, %s32
      %p46 = scmp.eq.s32.totalorder %s24, 1
      %p47 = por %p45, %p46
      %p49 = scmp.ne.s32.totalorder %s32, %s48
      %p50 = scmp.eq.s32.totalorder %s24, 0
      %p51 = por %p49, %p50
      %s53 = sadd.s32 %s52, 1
      %p56 = scmp.eq.s32.totalorder %s18, 1
      %p57 = scmp.ne.s32.totalorder %s52, %s54
      %p58 = scmp.eq.s32.totalorder %s18, 0
      %p59 = por %p57, %p58
      %p60 = scmp.ne.s32.totalorder %s52, %s54
      %p61 = scmp.eq.s32.totalorder %s23, 1
      %p62 = por %p60, %p61
      %p63 = scmp.ne.s32.totalorder %s54, %s55
      %p64 = scmp.eq.s32.totalorder %s23, 0
      %p65 = por %p63, %p64
      %p66 = scmp.ne.s32.totalorder %s54, %s55
      %p67 = scmp.eq.s32.totalorder %s24, 1
      %p68 = por %p66, %p67
      %p70 = scmp.ne.s32.totalorder %s55, %s69
      %p71 = scmp.eq.s32.totalorder %s24, 0
      %p72 = por %p70, %p71
      %s74 = sadd.s32 %s73, 1
      %p77 = scmp.eq.s32.totalorder %s18, 1
      %p78 = scmp.ne.s32.totalorder %s73, %s75
      %p79 = scmp.eq.s32.totalorder %s18, 0
      %p80 = por %p78, %p79
      %p81 = scmp.ne.s32.totalorder %s73, %s75
      %p82 = scmp.eq.s32.totalorder %s23, 1
      %p83 = por %p81, %p82
      %p84 = scmp.ne.s32.totalorder %s75, %s76
      %p85 = scmp.eq.s32.totalorder %s23, 0
      %p86 = por %p84, %p85
      %p87 = scmp.ne.s32.totalorder %s75, %s76
      %p88 = scmp.eq.s32.totalorder %s24, 1
      %p89 = por %p87, %p88
      %p91 = scmp.ne.s32.totalorder %s76, %s90
      %p92 = scmp.eq.s32.totalorder %s24, 0
      %p93 = por %p91, %p92
      %s94 = ssub.s32 %s18, %s25
      %p95 = scmp.eq.s32.totalorder %s94, 0
      %s97 = sadd.s32 %s96, 1
      %s98 = scalar_select %p95, %s96, %s97
      %p101 = pneg %p95
      %p102 = scmp.eq.s32.totalorder %s18, 1
      %p103 = por %p101, %p102
      %p104 = scmp.ne.s32.totalorder %s96, %s99
      %p105 = scmp.eq.s32.totalorder %s18, 0
      %p106 = por %p104, %p105
      %p107 = scmp.ne.s32.totalorder %s96, %s99
      %p108 = scmp.eq.s32.totalorder %s23, 1
      %p109 = por %p107, %p108
      %p110 = scmp.ne.s32.totalorder %s99, %s100
      %p111 = scmp.eq.s32.totalorder %s23, 0
      %p112 = por %p110, %p111
      %p113 = scmp.ne.s32.totalorder %s99, %s100
      %p114 = scmp.eq.s32.totalorder %s24, 1
      %p115 = por %p113, %p114
      %p117 = scmp.ne.s32.totalorder %s100, %s116
      %p118 = scmp.eq.s32.totalorder %s24, 0
      %p119 = por %p117, %p118
      %s120 = ssub.s32 %s18, %s25
      %p121 = scmp.eq.s32.totalorder %s120, 0
      %s123 = sadd.s32 %s122, 1
      %s124 = scalar_select %p121, %s122, %s123
      %p127 = pneg %p121
      %p128 = scmp.eq.s32.totalorder %s18, 1
      %p129 = por %p127, %p128
      %p130 = scmp.ne.s32.totalorder %s122, %s125
      %p131 = scmp.eq.s32.totalorder %s18, 0
      %p132 = por %p130, %p131
      %p133 = scmp.ne.s32.totalorder %s122, %s125
      %p134 = scmp.eq.s32.totalorder %s23, 1
      %p135 = por %p133, %p134
      %p136 = scmp.ne.s32.totalorder %s125, %s126
      %p137 = scmp.eq.s32.totalorder %s23, 0
      %p138 = por %p136, %p137
      %p139 = scmp.ne.s32.totalorder %s125, %s126
      %p140 = scmp.eq.s32.totalorder %s24, 1
      %p141 = por %p139, %p140
      %p143 = scmp.ne.s32.totalorder %s126, %s142
      %p144 = scmp.eq.s32.totalorder %s24, 0
      %p145 = por %p143, %p144
      %s146 = ssub.s32 %s18, %s25
      %p147 = scmp.eq.s32.totalorder %s146, 0
      %s149 = sadd.s32 %s148, 1
      %s150 = scalar_select %p147, %s148, %s149
      %p153 = pneg %p147
      %p154 = scmp.eq.s32.totalorder %s18, 1
      %p155 = por %p153, %p154
      %p156 = scmp.ne.s32.totalorder %s148, %s151
      %p157 = scmp.eq.s32.totalorder %s18, 0
      %p158 = por %p156, %p157
      %p159 = scmp.ne.s32.totalorder %s148, %s151
      %p160 = scmp.eq.s32.totalorder %s23, 1
      %p161 = por %p159, %p160
      %p162 = scmp.ne.s32.totalorder %s151, %s152
      %p163 = scmp.eq.s32.totalorder %s23, 0
      %p164 = por %p162, %p163
      %p165 = scmp.ne.s32.totalorder %s151, %s152
      %p166 = scmp.eq.s32.totalorder %s24, 1
      %p167 = por %p165, %p166
      %p169 = scmp.ne.s32.totalorder %s152, %s168
      %p170 = scmp.eq.s32.totalorder %s24, 0
      %p171 = por %p169, %p170
      %p172 = scmp.le.s32.totalorder 1, %s18
      %p173 = scmp.lt.s32.totalorder %s18, 3
      %p174 = pnand %p172, %p173
      %p175 = pneg %p174
      // Predicated region
      $region9: #{tpu_custom_call.1} parent=5 // pred_check
        _
      $region10: #{tpu_custom_call.1} parent=5 // pred_check_branch
        %177 = sbr.rel (%p174) target = $region12
      $region11: #{tpu_custom_call.1} parent=5 // pred_region
        %s178 = ssub.s32 %s18, 1
        // Predicated region
        $region13: #{tpu_custom_call.1} parent=11 // pred_check
          %p179 = pneg %p65
        $region14: #{tpu_custom_call.1} parent=11 // pred_check_branch
          %181 = sbr.rel (%p179) target = $region16
        $region15: #{tpu_custom_call.1} parent=11 // pred_region
          _
        $region16: #{tpu_custom_call.1} parent=11 // pred_fallthru
          _
        // Predicated region
        $region17: #{tpu_custom_call.1} parent=11 // pred_check
          %p182 = pneg %p86
        $region18: #{tpu_custom_call.1} parent=11 // pred_check_branch
          %184 = sbr.rel (%p182) target = $region20
        $region19: #{tpu_custom_call.1} parent=11 // pred_region
          _
        $region20: #{tpu_custom_call.1} parent=11 // pred_fallthru
          _
      $region12: #{tpu_custom_call.1} parent=5 // pred_fallthru
        _
      %p185 = scmp.lt.s32.totalorder %s18, 2
      // Predicated region
      $region21: #{tpu_custom_call.1} parent=5 // pred_check
        %p186 = pneg %p185
      $region22: #{tpu_custom_call.1} parent=5 // pred_check_branch
        %188 = sbr.rel (%p186) target = $region24
      $region23: #{tpu_custom_call.1} parent=5 // pred_region
        // Predicated region
        $region25: #{tpu_custom_call.1} parent=23 // pred_check
          %p189 = pneg %p38
        $region26: #{tpu_custom_call.1} parent=23 // pred_check_branch
          %191 = sbr.rel (%p189) target = $region28
        $region27: #{tpu_custom_call.1} parent=23 // pred_region
          %p192 = scmp.lt.s32.totalorder %s18, 1
          %s193 = scalar_select %p192, %s18, 1
          %s194 = smul.addr %s193, 54
          %s195 = smul.addr %s194, 4
          %s196 = scalar_lea.vmem %s0, %s195
        $region28: #{tpu_custom_call.1} parent=23 // pred_fallthru
          _
      $region24: #{tpu_custom_call.1} parent=5 // pred_fallthru
        _
      %p197 = scmp.le.s32.totalorder 1, %s18
      %p198 = scmp.lt.s32.totalorder %s18, 3
      %p199 = pnand %p197, %p198
      %p200 = pneg %p199
      // Predicated region
      $region29: #{tpu_custom_call.1} parent=5 // pred_check
        _
      $region30: #{tpu_custom_call.1} parent=5 // pred_check_branch
        %202 = sbr.rel (%p199) target = $region32
      $region31: #{tpu_custom_call.1} parent=5 // pred_region
        %s203 = ssub.s32 %s18, 1
        %p204 = scmp.lt.s32.totalorder %s23, 1
        %s205 = scalar_select %p204, %s23, 1
        %s206 = smul.addr %s205, 54
        %s207 = smul.addr %s206, 4
        %s208 = scalar_lea.vmem %s0, %s207
        %p209 = pneg %p44
        %p210 = pneg %p41
        %p211 = pneg %p65
        %p212 = pneg %p62
        %p213 = pneg %p86
        %p214 = pneg %p83
        %p215 = pneg %p112
        %p216 = pneg %p109
        %s217 = sand.u32 %s99, 1
        %s218 = scalar_lea.sflag [#allocation3], %s217
        %s219 = sand.u32 %s99, 1
        %s220 = smul.addr %s219, 256
        %s221 = scalar_lea.vmem [#allocation2], %s220
        %p222 = pneg %p138
        %p223 = pneg %p135
        %s224 = sand.u32 %s23, 1
        %s225 = scalar_lea.sflag [#allocation5], %s224
        %s226 = sand.u32 %s125, 1
        %s227 = scalar_lea.vmem [#allocation4], %s226
        %p228 = pneg %p164
        %p229 = pneg %p161
        %s230 = sand.u32 %s23, 1
        %s231 = scalar_lea.sflag [#allocation5], %s230
        %s232 = sand.u32 %s151, 1
        %s233 = scalar_lea.vmem [#allocation6], %s232
        %p234 = scmp.lt.s32.totalorder %s23, 1
        %s235 = scalar_select %p234, %s23, 1
        %s236 = smul.addr %s235, 54
        %s237 = smul.addr %s236, 4
        %s238 = scalar_lea.vmem %s0, %s237
        %v240 = vld [vmem:[%s238] sm:$0xf]
        %v241 = vld [vmem:[%s238 + $0x4] sm:$0xf]
        %v242 = vld [vmem:[%s238 + $0x8] sm:$0x1]
        %v243 = vld [vmem:[%s238 + $0xc] sm:$0xf]
        %v244 = vld [vmem:[%s238 + $0x10] sm:$0xf]
        %v245 = vld [vmem:[%s238 + $0x14] sm:$0x1]
        %v246 = vld [vmem:[%s238 + $0x18] sm:$0xf]
        %v247 = vld [vmem:[%s238 + $0x1c] sm:$0xf]
        %v248 = vld [vmem:[%s238 + $0x20] sm:$0x1]
        %v249 = vld [vmem:[%s238 + $0x24] sm:$0xf]
        %v250 = vld [vmem:[%s238 + $0x28] sm:$0xf]
        %v251 = vld [vmem:[%s238 + $0x2c] sm:$0x1]
        %v252 = vld [vmem:[%s238 + $0x30] sm:$0xf]
        %v253 = vld [vmem:[%s238 + $0x34] sm:$0xf]
        %v254 = vld [vmem:[%s238 + $0x38] sm:$0x1]
        %v255 = vld [vmem:[%s238 + $0x3c] sm:$0xf]
        %v256 = vld [vmem:[%s238 + $0x40] sm:$0xf]
        %v257 = vld [vmem:[%s238 + $0x44] sm:$0x1]
        %v258 = vld [vmem:[%s238 + $0x48] sm:$0xf]
        %v259 = vld [vmem:[%s238 + $0x4c] sm:$0xf]
        %v260 = vld [vmem:[%s238 + $0x50] sm:$0x1]
        %v261 = vld [vmem:[%s238 + $0x54] sm:$0xf]
        %v262 = vld [vmem:[%s238 + $0x58] sm:$0xf]
        %v263 = vld [vmem:[%s238 + $0x5c] sm:$0x1]
        %v264 = vld [vmem:[%s238 + $0x60] sm:$0xf]
        %v265 = vld [vmem:[%s238 + $0x64] sm:$0xf]
        %v266 = vld [vmem:[%s238 + $0x68] sm:$0x1]
        %v267 = vld [vmem:[%s238 + $0x6c] sm:$0xf]
        %v268 = vld [vmem:[%s238 + $0x70] sm:$0xf]
        %v269 = vld [vmem:[%s238 + $0x74] sm:$0x1]
        %v270 = vld [vmem:[%s238 + $0x78] sm:$0xf]
        %v271 = vld [vmem:[%s238 + $0x7c] sm:$0xf]
        %v272 = vld [vmem:[%s238 + $0x80] sm:$0x1]
        %v273 = vld [vmem:[%s238 + $0x84] sm:$0xf]
        %v274 = vld [vmem:[%s238 + $0x88] sm:$0xf]
        %v275 = vld [vmem:[%s238 + $0x8c] sm:$0x1]
        %v276 = vld [vmem:[%s238 + $0x90] sm:$0xf]
        %v277 = vld [vmem:[%s238 + $0x94] sm:$0xf]
        %v278 = vld [vmem:[%s238 + $0x98] sm:$0x1]
        %v279 = vld [vmem:[%s238 + $0x9c] sm:$0xf]
        %v280 = vld [vmem:[%s238 + $0xa0] sm:$0xf]
        %v281 = vld [vmem:[%s238 + $0xa4] sm:$0x1]
        %v282 = vld [vmem:[%s238 + $0xa8] sm:$0xf]
        %v283 = vld [vmem:[%s238 + $0xac] sm:$0xf]
        %v284 = vld [vmem:[%s238 + $0xb0] sm:$0x1]
        %v285 = vld [vmem:[%s238 + $0xb4] sm:$0xf]
        %v286 = vld [vmem:[%s238 + $0xb8] sm:$0xf]
        %v287 = vld [vmem:[%s238 + $0xbc] sm:$0x1]
        %v288 = vld [vmem:[%s238 + $0xc0] sm:$0xf]
        %v289 = vld [vmem:[%s238 + $0xc4] sm:$0xf]
        %v290 = vld [vmem:[%s238 + $0xc8] sm:$0x1]
        %v291 = vld [vmem:[%s238 + $0xcc] sm:$0xf]
        %v292 = vld [vmem:[%s238 + $0xd0] sm:$0xf]
        %v293 = vld [vmem:[%s238 + $0xd4] sm:$0x1]
        %v294 = vld [vmem:[%s1] sm:$0x3]
        %vm295 = vsmask.f32 3328
        %vm296 = vsmask.f32 7440
        %vm297 = vmor %vm295, %vm296
        %v299 = vshrl.u32 %v240, 16
        %v301 = vrot.slane %v299, 4
        %v302 = vshll.u32 %v240, 16
        %v304 = vrot.slane %v302, 5
        %v305 = vor.u32 %v301, %v304
        %v306 = vrot.slane %v305, 4
        %v308 = vshll.u32 %v241, 16
        %v310 = vrot.slane %v308, 5
        %v311 = vsel %vm297, %v306, %v310
        %v312 = vshrl.u32 %v241, 16
        %v314 = vrot.slane %v312, 4
        %v315 = vor.u32 %v314, %v310
        %v316 = vrot.slane %v315, 4
        %v318 = vshll.u32 %v242, 16
        %v320 = vrot.slane %v318, 5
        %v321 = vsel %vm297, %v316, %v320
        %v323 = vshrl.u32 %v243, 16
        %v325 = vrot.slane %v323, 4
        %v326 = vshll.u32 %v243, 16
        %v328 = vrot.slane %v326, 5
        %v329 = vor.u32 %v325, %v328
        %v330 = vrot.slane %v329, 4
        %v332 = vshll.u32 %v244, 16
        %v334 = vrot.slane %v332, 5
        %v335 = vsel %vm297, %v330, %v334
        %v336 = vshrl.u32 %v244, 16
        %v338 = vrot.slane %v336, 4
        %v339 = vor.u32 %v338, %v334
        %v340 = vrot.slane %v339, 4
        %v342 = vshll.u32 %v245, 16
        %v344 = vrot.slane %v342, 5
        %v345 = vsel %vm297, %v340, %v344
        %v347 = vshrl.u32 %v246, 16
        %v349 = vrot.slane %v347, 4
        %v350 = vshll.u32 %v246, 16
        %v352 = vrot.slane %v350, 5
        %v353 = vor.u32 %v349, %v352
        %v354 = vrot.slane %v353, 4
        %v356 = vshll.u32 %v247, 16
        %v358 = vrot.slane %v356, 5
        %v359 = vsel %vm297, %v354, %v358
        %v360 = vshrl.u32 %v247, 16
        %v362 = vrot.slane %v360, 4
        %v363 = vor.u32 %v362, %v358
        %v364 = vrot.slane %v363, 4
        %v366 = vshll.u32 %v248, 16
        %v368 = vrot.slane %v366, 5
        %v369 = vsel %vm297, %v364, %v368
        %v371 = vshrl.u32 %v249, 16
        %v373 = vrot.slane %v371, 4
        %v374 = vshll.u32 %v249, 16
        %v376 = vrot.slane %v374, 5
        %v377 = vor.u32 %v373, %v376
        %v378 = vrot.slane %v377, 4
        %v380 = vshll.u32 %v250, 16
        %v382 = vrot.slane %v380, 5
        %v383 = vsel %vm297, %v378, %v382
        %v384 = vshrl.u32 %v250, 16
        %v386 = vrot.slane %v384, 4
        %v387 = vor.u32 %v386, %v382
        %v388 = vrot.slane %v387, 4
        %v390 = vshll.u32 %v251, 16
        %v392 = vrot.slane %v390, 5
        %v393 = vsel %vm297, %v388, %v392
        %v395 = vshrl.u32 %v252, 16
        %v397 = vrot.slane %v395, 4
        %v398 = vshll.u32 %v252, 16
        %v400 = vrot.slane %v398, 5
        %v401 = vor.u32 %v397, %v400
        %v402 = vrot.slane %v401, 4
        %v404 = vshll.u32 %v253, 16
        %v406 = vrot.slane %v404, 5
        %v407 = vsel %vm297, %v402, %v406
        %v408 = vshrl.u32 %v253, 16
        %v410 = vrot.slane %v408, 4
        %v411 = vor.u32 %v410, %v406
        %v412 = vrot.slane %v411, 4
        %v414 = vshll.u32 %v254, 16
        %v416 = vrot.slane %v414, 5
        %v417 = vsel %vm297, %v412, %v416
        %v419 = vshrl.u32 %v255, 16
        %v421 = vrot.slane %v419, 4
        %v422 = vshll.u32 %v255, 16
        %v424 = vrot.slane %v422, 5
        %v425 = vor.u32 %v421, %v424
        %v426 = vrot.slane %v425, 4
        %v428 = vshll.u32 %v256, 16
        %v430 = vrot.slane %v428, 5
        %v431 = vsel %vm297, %v426, %v430
        %v432 = vshrl.u32 %v256, 16
        %v434 = vrot.slane %v432, 4
        %v435 = vor.u32 %v434, %v430
        %v436 = vrot.slane %v435, 4
        %v438 = vshll.u32 %v257, 16
        %v440 = vrot.slane %v438, 5
        %v441 = vsel %vm297, %v436, %v440
        %v443 = vshrl.u32 %v258, 16
        %v445 = vrot.slane %v443, 4
        %v446 = vshll.u32 %v258, 16
        %v448 = vrot.slane %v446, 5
        %v449 = vor.u32 %v445, %v448
        %v450 = vrot.slane %v449, 4
        %v452 = vshll.u32 %v259, 16
        %v454 = vrot.slane %v452, 5
        %v455 = vsel %vm297, %v450, %v454
        %v456 = vshrl.u32 %v259, 16
        %v458 = vrot.slane %v456, 4
        %v459 = vor.u32 %v458, %v454
        %v460 = vrot.slane %v459, 4
        %v462 = vshll.u32 %v260, 16
        %v464 = vrot.slane %v462, 5
        %v465 = vsel %vm297, %v460, %v464
        %v467 = vshrl.u32 %v261, 16
        %v469 = vrot.slane %v467, 4
        %v470 = vshll.u32 %v261, 16
        %v472 = vrot.slane %v470, 5
        %v473 = vor.u32 %v469, %v472
        %v474 = vrot.slane %v473, 4
        %v476 = vshll.u32 %v262, 16
        %v478 = vrot.slane %v476, 5
        %v479 = vsel %vm297, %v474, %v478
        %v480 = vshrl.u32 %v262, 16
        %v482 = vrot.slane %v480, 4
        %v483 = vor.u32 %v482, %v478
        %v484 = vrot.slane %v483, 4
        %v486 = vshll.u32 %v263, 16
        %v488 = vrot.slane %v486, 5
        %v489 = vsel %vm297, %v484, %v488
        %v491 = vshrl.u32 %v264, 16
        %v493 = vrot.slane %v491, 4
        %v494 = vshll.u32 %v264, 16
        %v496 = vrot.slane %v494, 5
        %v497 = vor.u32 %v493, %v496
        %v498 = vrot.slane %v497, 4
        %v500 = vshll.u32 %v265, 16
        %v502 = vrot.slane %v500, 5
        %v503 = vsel %vm297, %v498, %v502
        %v504 = vshrl.u32 %v265, 16
        %v506 = vrot.slane %v504, 4
        %v507 = vor.u32 %v506, %v502
        %v508 = vrot.slane %v507, 4
        %v510 = vshll.u32 %v266, 16
        %v512 = vrot.slane %v510, 5
        %v513 = vsel %vm297, %v508, %v512
        %v515 = vshrl.u32 %v267, 16
        %v517 = vrot.slane %v515, 4
        %v518 = vshll.u32 %v267, 16
        %v520 = vrot.slane %v518, 5
        %v521 = vor.u32 %v517, %v520
        %v522 = vrot.slane %v521, 4
        %v524 = vshll.u32 %v268, 16
        %v526 = vrot.slane %v524, 5
        %v527 = vsel %vm297, %v522, %v526
        %v528 = vshrl.u32 %v268, 16
        %v530 = vrot.slane %v528, 4
        %v531 = vor.u32 %v530, %v526
        %v532 = vrot.slane %v531, 4
        %v534 = vshll.u32 %v269, 16
        %v536 = vrot.slane %v534, 5
        %v537 = vsel %vm297, %v532, %v536
        %v539 = vshrl.u32 %v270, 16
        %v541 = vrot.slane %v539, 4
        %v542 = vshll.u32 %v270, 16
        %v544 = vrot.slane %v542, 5
        %v545 = vor.u32 %v541, %v544
        %v546 = vrot.slane %v545, 4
        %v548 = vshll.u32 %v271, 16
        %v550 = vrot.slane %v548, 5
        %v551 = vsel %vm297, %v546, %v550
        %v552 = vshrl.u32 %v271, 16
        %v554 = vrot.slane %v552, 4
        %v555 = vor.u32 %v554, %v550
        %v556 = vrot.slane %v555, 4
        %v558 = vshll.u32 %v272, 16
        %v560 = vrot.slane %v558, 5
        %v561 = vsel %vm297, %v556, %v560
        %v563 = vshrl.u32 %v273, 16
        %v565 = vrot.slane %v563, 4
        %v566 = vshll.u32 %v273, 16
        %v568 = vrot.slane %v566, 5
        %v569 = vor.u32 %v565, %v568
        %v570 = vrot.slane %v569, 4
        %v572 = vshll.u32 %v274, 16
        %v574 = vrot.slane %v572, 5
        %v575 = vsel %vm297, %v570, %v574
        %v576 = vshrl.u32 %v274, 16
        %v578 = vrot.slane %v576, 4
        %v579 = vor.u32 %v578, %v574
        %v580 = vrot.slane %v579, 4
        %v582 = vshll.u32 %v275, 16
        %v584 = vrot.slane %v582, 5
        %v585 = vsel %vm297, %v580, %v584
        %v587 = vshrl.u32 %v276, 16
        %v589 = vrot.slane %v587, 4
        %v590 = vshll.u32 %v276, 16
        %v592 = vrot.slane %v590, 5
        %v593 = vor.u32 %v589, %v592
        %v594 = vrot.slane %v593, 4
        %v596 = vshll.u32 %v277, 16
        %v598 = vrot.slane %v596, 5
        %v599 = vsel %vm297, %v594, %v598
        %v600 = vshrl.u32 %v277, 16
        %v602 = vrot.slane %v600, 4
        %v603 = vor.u32 %v602, %v598
        %v604 = vrot.slane %v603, 4
        %v606 = vshll.u32 %v278, 16
        %v608 = vrot.slane %v606, 5
        %v609 = vsel %vm297, %v604, %v608
        %v611 = vshrl.u32 %v279, 16
        %v613 = vrot.slane %v611, 4
        %v614 = vshll.u32 %v279, 16
        %v616 = vrot.slane %v614, 5
        %v617 = vor.u32 %v613, %v616
        %v618 = vrot.slane %v617, 4
        %v620 = vshll.u32 %v280, 16
        %v622 = vrot.slane %v620, 5
        %v623 = vsel %vm297, %v618, %v622
        %v624 = vshrl.u32 %v280, 16
        %v626 = vrot.slane %v624, 4
        %v627 = vor.u32 %v626, %v622
        %v628 = vrot.slane %v627, 4
        %v630 = vshll.u32 %v281, 16
        %v632 = vrot.slane %v630, 5
        %v633 = vsel %vm297, %v628, %v632
        %v635 = vshrl.u32 %v282, 16
        %v637 = vrot.slane %v635, 4
        %v638 = vshll.u32 %v282, 16
        %v640 = vrot.slane %v638, 5
        %v641 = vor.u32 %v637, %v640
        %v642 = vrot.slane %v641, 4
        %v644 = vshll.u32 %v283, 16
        %v646 = vrot.slane %v644, 5
        %v647 = vsel %vm297, %v642, %v646
        %v648 = vshrl.u32 %v283, 16
        %v650 = vrot.slane %v648, 4
        %v651 = vor.u32 %v650, %v646
        %v652 = vrot.slane %v651, 4
        %v654 = vshll.u32 %v284, 16
        %v656 = vrot.slane %v654, 5
        %v657 = vsel %vm297, %v652, %v656
        %v659 = vshrl.u32 %v285, 16
        %v661 = vrot.slane %v659, 4
        %v662 = vshll.u32 %v285, 16
        %v664 = vrot.slane %v662, 5
        %v665 = vor.u32 %v661, %v664
        %v666 = vrot.slane %v665, 4
        %v668 = vshll.u32 %v286, 16
        %v670 = vrot.slane %v668, 5
        %v671 = vsel %vm297, %v666, %v670
        %v672 = vshrl.u32 %v286, 16
        %v674 = vrot.slane %v672, 4
        %v675 = vor.u32 %v674, %v670
        %v676 = vrot.slane %v675, 4
        %v678 = vshll.u32 %v287, 16
        %v680 = vrot.slane %v678, 5
        %v681 = vsel %vm297, %v676, %v680
        %s682 = scalar_lea.vmem %s1, 2
        %v683 = vld [vmem:[%s682] sm:$0x3]
        %v684 = vunpack.c.l.b16 %v311
        %v685 = vunpack.c.l.b16 %v321
        %v686 = vunpack.c.l.b16 %v335
        %v687 = vunpack.c.l.b16 %v345
        %v688 = vunpack.c.l.b16 %v359
        %v689 = vunpack.c.l.b16 %v369
        %v690 = vunpack.c.l.b16 %v383
        %v691 = vunpack.c.l.b16 %v393
        %v692 = vunpack.c.l.b16 %v407
        %v693 = vunpack.c.l.b16 %v417
        %v694 = vunpack.c.l.b16 %v431
        %v695 = vunpack.c.l.b16 %v441
        %v696 = vunpack.c.l.b16 %v455
        %v697 = vunpack.c.l.b16 %v465
        %v698 = vunpack.c.l.b16 %v479
        %v699 = vunpack.c.l.b16 %v489
        %v700 = vunpack.c.l.b16 %v503
        %v701 = vunpack.c.l.b16 %v513
        %v702 = vunpack.c.l.b16 %v527
        %v703 = vunpack.c.l.b16 %v537
        %v704 = vunpack.c.l.b16 %v551
        %v705 = vunpack.c.l.b16 %v561
        %v706 = vunpack.c.l.b16 %v575
        %v707 = vunpack.c.l.b16 %v585
        %v708 = vunpack.c.l.b16 %v599
        %v709 = vunpack.c.l.b16 %v609
        %v710 = vunpack.c.l.b16 %v623
        %v711 = vunpack.c.l.b16 %v633
        %v712 = vunpack.c.l.b16 %v647
        %v713 = vunpack.c.l.b16 %v657
        %v714 = vunpack.c.l.b16 %v671
        %v715 = vunpack.c.l.b16 %v681
        %v716 = vpack.c.b16 %v685, %v684
        %v717 = vpack.c.b16 %v687, %v686
        %v718 = vpack.c.b16 %v689, %v688
        %v719 = vpack.c.b16 %v691, %v690
        %v720 = vpack.c.b16 %v693, %v692
        %v721 = vpack.c.b16 %v695, %v694
        %v722 = vpack.c.b16 %v697, %v696
        %v723 = vpack.c.b16 %v699, %v698
        %v724 = vpack.c.b16 %v701, %v700
        %v725 = vpack.c.b16 %v703, %v702
        %v726 = vpack.c.b16 %v705, %v704
        %v727 = vpack.c.b16 %v707, %v706
        %v728 = vpack.c.b16 %v709, %v708
        %v729 = vpack.c.b16 %v711, %v710
        %v730 = vpack.c.b16 %v713, %v712
        %v731 = vpack.c.b16 %v715, %v714
        %vm732 = vcmask 31744
        %v734 = vsel %vm732, %v716, 0
        %v737 = vsel %vm732, %v717, 0
        %v740 = vsel %vm732, %v718, 0
        %v743 = vsel %vm732, %v719, 0
        %v746 = vsel %vm732, %v720, 0
        %v749 = vsel %vm732, %v721, 0
        %v752 = vsel %vm732, %v722, 0
        %v755 = vsel %vm732, %v723, 0
        %v758 = vsel %vm732, %v724, 0
        %v761 = vsel %vm732, %v725, 0
        %v764 = vsel %vm732, %v726, 0
        %v767 = vsel %vm732, %v727, 0
        %v770 = vsel %vm732, %v728, 0
        %v773 = vsel %vm732, %v729, 0
        %v776 = vsel %vm732, %v730, 0
        %v779 = vsel %vm732, %v731, 0
        %vm781 = vcmask 1041408
        %v783 = vsel %vm781, %v683, 0
        %785 = vmatprep.subr.bf16.mxu0 0
        %786 = vmatpush1.bf16.msra.mxu0 %v783
        %787 = vmatprep.subr.bf16.mxu0 0
        %788 = vmatpush1.bf16.msra.mxu0 0
        %789 = vmatprep.subr.bf16.mxu0 0
        %790 = vmatpush1.bf16.msra.mxu0 0
        %791 = vmatprep.subr.bf16.mxu0 0
        %792 = vmatpush1.bf16.msra.mxu0 0
        %793 = vmatprep.subr.bf16.mxu0 0
        %794 = vmatpush1.bf16.msra.mxu0 0
        %795 = vmatprep.subr.bf16.mxu0 0
        %796 = vmatpush1.bf16.msra.mxu0 0
        %797 = vmatprep.subr.bf16.mxu0 0
        %798 = vmatpush1.bf16.msra.mxu0 0
        %799 = vmatprep.subr.bf16.mxu0 0
        %800 = vmatpush1.bf16.msra.mxu0 0
        %801 = vmatprep.subr.bf16.mxu0 0
        %802 = vmatpush1.bf16.msra.mxu0 0
        %803 = vmatprep.subr.bf16.mxu0 0
        %804 = vmatpush1.bf16.msra.mxu0 0
        %805 = vmatprep.subr.bf16.mxu0 0
        %806 = vmatpush1.bf16.msra.mxu0 0
        %807 = vmatprep.subr.bf16.mxu0 0
        %808 = vmatpush1.bf16.msra.mxu0 0
        %809 = vmatprep.subr.bf16.mxu0 0
        %810 = vmatpush1.bf16.msra.mxu0 0
        %811 = vmatprep.subr.bf16.mxu0 0
        %812 = vmatpush1.bf16.msra.mxu0 0
        %813 = vmatprep.subr.bf16.mxu0 0
        %814 = vmatpush1.bf16.msra.mxu0 0
        %815 = vmatprep.subr.bf16.mxu0 0
        %816 = vmatpush1.bf16.msra.mxu0 0
        %817 = vmatprep.mubr.bf16.mxu0 0
        %818 = vmatmul.mubr.bf16.gmra.mrb[0].mxu0 %v734
        %v819 = vpop.f32.mrb[0].mxu0
        %v820 = vadd.f32 0.0, %v819
        %v821 = vpop.f32.mrb[0].mxu0
        %v822 = vpop.f32.mrb[0].mxu0
        %v823 = vadd.f32 0.0, %v822
        %v824 = vpop.f32.mrb[0].mxu0
        %825 = vmatprep.mubr.bf16.mxu0 0
        %826 = vmatmul.mubr.bf16.gmra.mrb[0].mxu0 %v737
        %v827 = vpop.f32.mrb[0].mxu0
        %v828 = vadd.f32 0.0, %v827
        %v829 = vpop.f32.mrb[0].mxu0
        %v830 = vpop.f32.mrb[0].mxu0
        %v831 = vadd.f32 0.0, %v830
        %v832 = vpop.f32.mrb[0].mxu0
        %833 = vmatprep.mubr.bf16.mxu0 0
        %834 = vmatmul.mubr.bf16.gmra.mrb[0].mxu0 %v740
        %v835 = vpop.f32.mrb[0].mxu0
        %v836 = vadd.f32 0.0, %v835
        %v837 = vpop.f32.mrb[0].mxu0
        %v838 = vpop.f32.mrb[0].mxu0
        %v839 = vadd.f32 0.0, %v838
        %v840 = vpop.f32.mrb[0].mxu0
        %841 = vmatprep.mubr.bf16.mxu0 0
        %842 = vmatmul.mubr.bf16.gmra.mrb[0].mxu0 %v743
        %v843 = vpop.f32.mrb[0].mxu0
        %v844 = vadd.f32 0.0, %v843
        %v845 = vpop.f32.mrb[0].mxu0
        %v846 = vpop.f32.mrb[0].mxu0
        %v847 = vadd.f32 0.0, %v846
        %v848 = vpop.f32.mrb[0].mxu0
        %849 = vmatprep.mubr.bf16.mxu0 0
        %850 = vmatmul.mubr.bf16.gmra.mrb[0].mxu0 %v746
        %v851 = vpop.f32.mrb[0].mxu0
        %v852 = vadd.f32 0.0, %v851
        %v853 = vpop.f32.mrb[0].mxu0
        %v854 = vpop.f32.mrb[0].mxu0
        %v855 = vadd.f32 0.0, %v854
        %v856 = vpop.f32.mrb[0].mxu0
        %857 = vmatprep.mubr.bf16.mxu0 0
        %858 = vmatmul.mubr.bf16.gmra.mrb[0].mxu0 %v749
        %v859 = vpop.f32.mrb[0].mxu0
        %v860 = vadd.f32 0.0, %v859
        %v861 = vpop.f32.mrb[0].mxu0
        %v862 = vpop.f32.mrb[0].mxu0
        %v863 = vadd.f32 0.0, %v862
        %v864 = vpop.f32.mrb[0].mxu0
        %865 = vmatprep.mubr.bf16.mxu0 0
        %866 = vmatmul.mubr.bf16.gmra.mrb[0].mxu0 %v752
        %v867 = vpop.f32.mrb[0].mxu0
        %v868 = vadd.f32 0.0, %v867
        %v869 = vpop.f32.mrb[0].mxu0
        %v870 = vpop.f32.mrb[0].mxu0
        %v871 = vadd.f32 0.0, %v870
        %v872 = vpop.f32.mrb[0].mxu0
        %873 = vmatprep.mubr.bf16.mxu0 0
        %874 = vmatmul.mubr.bf16.gmra.mrb[0].mxu0 %v755
        %v875 = vpop.f32.mrb[0].mxu0
        %v876 = vadd.f32 0.0, %v875
        %v877 = vpop.f32.mrb[0].mxu0
        %v878 = vpop.f32.mrb[0].mxu0
        %v879 = vadd.f32 0.0, %v878
        %v880 = vpop.f32.mrb[0].mxu0
        %881 = vmatprep.mubr.bf16.mxu0 0
        %882 = vmatmul.mubr.bf16.gmra.mrb[0].mxu0 %v758
        %v883 = vpop.f32.mrb[0].mxu0
        %v884 = vadd.f32 0.0, %v883
        %v885 = vpop.f32.mrb[0].mxu0
        %v886 = vpop.f32.mrb[0].mxu0
        %v887 = vadd.f32 0.0, %v886
        %v888 = vpop.f32.mrb[0].mxu0
        %889 = vmatprep.mubr.bf16.mxu0 0
        %890 = vmatmul.mubr.bf16.gmra.mrb[0].mxu0 %v761
        %v891 = vpop.f32.mrb[0].mxu0
        %v892 = vadd.f32 0.0, %v891
        %v893 = vpop.f32.mrb[0].mxu0
        %v894 = vpop.f32.mrb[0].mxu0
        %v895 = vadd.f32 0.0, %v894
        %v896 = vpop.f32.mrb[0].mxu0
        %897 = vmatprep.mubr.bf16.mxu0 0
        %898 = vmatmul.mubr.bf16.gmra.mrb[0].mxu0 %v764
        %v899 = vpop.f32.mrb[0].mxu0
        %v900 = vadd.f32 0.0, %v899
        %v901 = vpop.f32.mrb[0].mxu0
        %v902 = vpop.f32.mrb[0].mxu0
        %v903 = vadd.f32 0.0, %v902
        %v904 = vpop.f32.mrb[0].mxu0
        %905 = vmatprep.mubr.bf16.mxu0 0
        %906 = vmatmul.mubr.bf16.gmra.mrb[0].mxu0 %v767
        %v907 = vpop.f32.mrb[0].mxu0
        %v908 = vadd.f32 0.0, %v907
        %v909 = vpop.f32.mrb[0].mxu0
        %v910 = vpop.f32.mrb[0].mxu0
        %v911 = vadd.f32 0.0, %v910
        %v912 = vpop.f32.mrb[0].mxu0
        %913 = vmatprep.mubr.bf16.mxu0 0
        %914 = vmatmul.mubr.bf16.gmra.mrb[0].mxu0 %v770
        %v915 = vpop.f32.mrb[0].mxu0
        %v916 = vadd.f32 0.0, %v915
        %v917 = vpop.f32.mrb[0].mxu0
        %v918 = vpop.f32.mrb[0].mxu0
        %v919 = vadd.f32 0.0, %v918
        %v920 = vpop.f32.mrb[0].mxu0
        %921 = vmatprep.mubr.bf16.mxu0 0
        %922 = vmatmul.mubr.bf16.gmra.mrb[0].mxu0 %v773
        %v923 = vpop.f32.mrb[0].mxu0
        %v924 = vadd.f32 0.0, %v923
        %v925 = vpop.f32.mrb[0].mxu0
        %v926 = vpop.f32.mrb[0].mxu0
        %v927 = vadd.f32 0.0, %v926
        %v928 = vpop.f32.mrb[0].mxu0
        %929 = vmatprep.mubr.bf16.mxu0 0
        %930 = vmatmul.mubr.bf16.gmra.mrb[0].mxu0 %v776
        %v931 = vpop.f32.mrb[0].mxu0
        %v932 = vadd.f32 0.0, %v931
        %v933 = vpop.f32.mrb[0].mxu0
        %v934 = vpop.f32.mrb[0].mxu0
        %v935 = vadd.f32 0.0, %v934
        %v936 = vpop.f32.mrb[0].mxu0
        %937 = vmatprep.mubr.bf16.mxu0 0
        %938 = vmatmul.mubr.bf16.gmra.mrb[0].mxu0 %v779
        %v939 = vpop.f32.mrb[0].mxu0
        %v940 = vadd.f32 0.0, %v939
        %v941 = vpop.f32.mrb[0].mxu0
        %v942 = vpop.f32.mrb[0].mxu0
        %v943 = vadd.f32 0.0, %v942
        %v944 = vpop.f32.mrb[0].mxu0
        %945 = vdwg.mxu0
        %v978 = vunpack.c.l.b16 %v240
        %v979 = vunpack.c.l.b16 %v241
        %v980 = vunpack.c.l.b16 %v243
        %v981 = vunpack.c.l.b16 %v244
        %v982 = vunpack.c.l.b16 %v246
        %v983 = vunpack.c.l.b16 %v247
        %v984 = vunpack.c.l.b16 %v249
        %v985 = vunpack.c.l.b16 %v250
        %v986 = vunpack.c.l.b16 %v252
        %v987 = vunpack.c.l.b16 %v253
        %v988 = vunpack.c.l.b16 %v255
        %v989 = vunpack.c.l.b16 %v256
        %v990 = vunpack.c.l.b16 %v258
        %v991 = vunpack.c.l.b16 %v259
        %v992 = vunpack.c.l.b16 %v261
        %v993 = vunpack.c.l.b16 %v262
        %v994 = vunpack.c.l.b16 %v264
        %v995 = vunpack.c.l.b16 %v265
        %v996 = vunpack.c.l.b16 %v267
        %v997 = vunpack.c.l.b16 %v268
        %v998 = vunpack.c.l.b16 %v270
        %v999 = vunpack.c.l.b16 %v271
        %v1000 = vunpack.c.l.b16 %v273
        %v1001 = vunpack.c.l.b16 %v274
        %v1002 = vunpack.c.l.b16 %v276
        %v1003 = vunpack.c.l.b16 %v277
        %v1004 = vunpack.c.l.b16 %v279
        %v1005 = vunpack.c.l.b16 %v280
        %v1006 = vunpack.c.l.b16 %v282
        %v1007 = vunpack.c.l.b16 %v283
        %v1008 = vunpack.c.l.b16 %v285
        %v1009 = vunpack.c.l.b16 %v286
        %v1010 = vpack.c.b16 %v979, %v978
        %v1011 = vpack.c.b16 %v981, %v980
        %v1012 = vpack.c.b16 %v983, %v982
        %v1013 = vpack.c.b16 %v985, %v984
        %v1014 = vpack.c.b16 %v987, %v986
        %v1015 = vpack.c.b16 %v989, %v988
        %v1016 = vpack.c.b16 %v991, %v990
        %v1017 = vpack.c.b16 %v993, %v992
        %v1018 = vpack.c.b16 %v995, %v994
        %v1019 = vpack.c.b16 %v997, %v996
        %v1020 = vpack.c.b16 %v999, %v998
        %v1021 = vpack.c.b16 %v1001, %v1000
        %v1022 = vpack.c.b16 %v1003, %v1002
        %v1023 = vpack.c.b16 %v1005, %v1004
        %v1024 = vpack.c.b16 %v1007, %v1006
        %v1025 = vpack.c.b16 %v1009, %v1008
        %v1027 = vsel %vm732, %v1010, 0
        %v1030 = vsel %vm732, %v1011, 0
        %v1033 = vsel %vm732, %v1012, 0
        %v1036 = vsel %vm732, %v1013, 0
        %v1039 = vsel %vm732, %v1014, 0
        %v1042 = vsel %vm732, %v1015, 0
        %v1045 = vsel %vm732, %v1016, 0
        %v1048 = vsel %vm732, %v1017, 0
        %v1051 = vsel %vm732, %v1018, 0
        %v1054 = vsel %vm732, %v1019, 0
        %v1057 = vsel %vm732, %v1020, 0
        %v1060 = vsel %vm732, %v1021, 0
        %v1063 = vsel %vm732, %v1022, 0
        %v1066 = vsel %vm732, %v1023, 0
        %v1069 = vsel %vm732, %v1024, 0
        %v1072 = vsel %vm732, %v1025, 0
        %v1075 = vsel %vm781, %v294, 0
        %1077 = vmatprep.subr.bf16.mxu0 0
        %1078 = vmatpush1.bf16.msra.mxu0 %v1075
        %1079 = vmatprep.subr.bf16.mxu0 0
        %1080 = vmatpush1.bf16.msra.mxu0 0
        %1081 = vmatprep.subr.bf16.mxu0 0
        %1082 = vmatpush1.bf16.msra.mxu0 0
        %1083 = vmatprep.subr.bf16.mxu0 0
        %1084 = vmatpush1.bf16.msra.mxu0 0
        %1085 = vmatprep.subr.bf16.mxu0 0
        %1086 = vmatpush1.bf16.msra.mxu0 0
        %1087 = vmatprep.subr.bf16.mxu0 0
        %1088 = vmatpush1.bf16.msra.mxu0 0
        %1089 = vmatprep.subr.bf16.mxu0 0
        %1090 = vmatpush1.bf16.msra.mxu0 0
        %1091 = vmatprep.subr.bf16.mxu0 0
        %1092 = vmatpush1.bf16.msra.mxu0 0
        %1093 = vmatprep.subr.bf16.mxu0 0
        %1094 = vmatpush1.bf16.msra.mxu0 0
        %1095 = vmatprep.subr.bf16.mxu0 0
        %1096 = vmatpush1.bf16.msra.mxu0 0
        %1097 = vmatprep.subr.bf16.mxu0 0
        %1098 = vmatpush1.bf16.msra.mxu0 0
        %1099 = vmatprep.subr.bf16.mxu0 0
        %1100 = vmatpush1.bf16.msra.mxu0 0
        %1101 = vmatprep.subr.bf16.mxu0 0
        %1102 = vmatpush1.bf16.msra.mxu0 0
        %1103 = vmatprep.subr.bf16.mxu0 0
        %1104 = vmatpush1.bf16.msra.mxu0 0
        %1105 = vmatprep.subr.bf16.mxu0 0
        %1106 = vmatpush1.bf16.msra.mxu0 0
        %1107 = vmatprep.subr.bf16.mxu0 0
        %1108 = vmatpush1.bf16.msra.mxu0 0
        %1109 = vmatprep.mubr.bf16.mxu0 0
        %1110 = vmatmul.mubr.bf16.gmra.mrb[0].mxu0 %v1027
        %v1111 = vpop.f32.mrb[0].mxu0
        %v1112 = vadd.f32 %v820, %v1111
        %v1113 = vpop.f32.mrb[0].mxu0
        %v1114 = vpop.f32.mrb[0].mxu0
        %v1115 = vadd.f32 %v823, %v1114
        %v1116 = vpop.f32.mrb[0].mxu0
        %1117 = vmatprep.mubr.bf16.mxu0 0
        %1118 = vmatmul.mubr.bf16.gmra.mrb[0].mxu0 %v1030
        %v1119 = vpop.f32.mrb[0].mxu0
        %v1120 = vadd.f32 %v828, %v1119
        %v1121 = vpop.f32.mrb[0].mxu0
        %v1122 = vpop.f32.mrb[0].mxu0
        %v1123 = vadd.f32 %v831, %v1122
        %v1124 = vpop.f32.mrb[0].mxu0
        %1125 = vmatprep.mubr.bf16.mxu0 0
        %1126 = vmatmul.mubr.bf16.gmra.mrb[0].mxu0 %v1033
        %v1127 = vpop.f32.mrb[0].mxu0
        %v1128 = vadd.f32 %v836, %v1127
        %v1129 = vpop.f32.mrb[0].mxu0
        %v1130 = vpop.f32.mrb[0].mxu0
        %v1131 = vadd.f32 %v839, %v1130
        %v1132 = vpop.f32.mrb[0].mxu0
        %1133 = vmatprep.mubr.bf16.mxu0 0
        %1134 = vmatmul.mubr.bf16.gmra.mrb[0].mxu0 %v1036
        %v1135 = vpop.f32.mrb[0].mxu0
        %v1136 = vadd.f32 %v844, %v1135
        %v1137 = vpop.f32.mrb[0].mxu0
        %v1138 = vpop.f32.mrb[0].mxu0
        %v1139 = vadd.f32 %v847, %v1138
        %v1140 = vpop.f32.mrb[0].mxu0
        %1141 = vmatprep.mubr.bf16.mxu0 0
        %1142 = vmatmul.mubr.bf16.gmra.mrb[0].mxu0 %v1039
        %v1143 = vpop.f32.mrb[0].mxu0
        %v1144 = vadd.f32 %v852, %v1143
        %v1145 = vpop.f32.mrb[0].mxu0
        %v1146 = vpop.f32.mrb[0].mxu0
        %v1147 = vadd.f32 %v855, %v1146
        %v1148 = vpop.f32.mrb[0].mxu0
        %1149 = vmatprep.mubr.bf16.mxu0 0
        %1150 = vmatmul.mubr.bf16.gmra.mrb[0].mxu0 %v1042
        %v1151 = vpop.f32.mrb[0].mxu0
        %v1152 = vadd.f32 %v860, %v1151
        %v1153 = vpop.f32.mrb[0].mxu0
        %v1154 = vpop.f32.mrb[0].mxu0
        %v1155 = vadd.f32 %v863, %v1154
        %v1156 = vpop.f32.mrb[0].mxu0
        %1157 = vmatprep.mubr.bf16.mxu0 0
        %1158 = vmatmul.mubr.bf16.gmra.mrb[0].mxu0 %v1045
        %v1159 = vpop.f32.mrb[0].mxu0
        %v1160 = vadd.f32 %v868, %v1159
        %v1161 = vpop.f32.mrb[0].mxu0
        %v1162 = vpop.f32.mrb[0].mxu0
        %v1163 = vadd.f32 %v871, %v1162
        %v1164 = vpop.f32.mrb[0].mxu0
        %1165 = vmatprep.mubr.bf16.mxu0 0
        %1166 = vmatmul.mubr.bf16.gmra.mrb[0].mxu0 %v1048
        %v1167 = vpop.f32.mrb[0].mxu0
        %v1168 = vadd.f32 %v876, %v1167
        %v1169 = vpop.f32.mrb[0].mxu0
        %v1170 = vpop.f32.mrb[0].mxu0
        %v1171 = vadd.f32 %v879, %v1170
        %v1172 = vpop.f32.mrb[0].mxu0
        %1173 = vmatprep.mubr.bf16.mxu0 0
        %1174 = vmatmul.mubr.bf16.gmra.mrb[0].mxu0 %v1051
        %v1175 = vpop.f32.mrb[0].mxu0
        %v1176 = vadd.f32 %v884, %v1175
        %v1177 = vpop.f32.mrb[0].mxu0
        %v1178 = vpop.f32.mrb[0].mxu0
        %v1179 = vadd.f32 %v887, %v1178
        %v1180 = vpop.f32.mrb[0].mxu0
        %1181 = vmatprep.mubr.bf16.mxu0 0
        %1182 = vmatmul.mubr.bf16.gmra.mrb[0].mxu0 %v1054
        %v1183 = vpop.f32.mrb[0].mxu0
        %v1184 = vadd.f32 %v892, %v1183
        %v1185 = vpop.f32.mrb[0].mxu0
        %v1186 = vpop.f32.mrb[0].mxu0
        %v1187 = vadd.f32 %v895, %v1186
        %v1188 = vpop.f32.mrb[0].mxu0
        %1189 = vmatprep.mubr.bf16.mxu0 0
        %1190 = vmatmul.mubr.bf16.gmra.mrb[0].mxu0 %v1057
        %v1191 = vpop.f32.mrb[0].mxu0
        %v1192 = vadd.f32 %v900, %v1191
        %v1193 = vpop.f32.mrb[0].mxu0
        %v1194 = vpop.f32.mrb[0].mxu0
        %v1195 = vadd.f32 %v903, %v1194
        %v1196 = vpop.f32.mrb[0].mxu0
        %1197 = vmatprep.mubr.bf16.mxu0 0
        %1198 = vmatmul.mubr.bf16.gmra.mrb[0].mxu0 %v1060
        %v1199 = vpop.f32.mrb[0].mxu0
        %v1200 = vadd.f32 %v908, %v1199
        %v1201 = vpop.f32.mrb[0].mxu0
        %v1202 = vpop.f32.mrb[0].mxu0
        %v1203 = vadd.f32 %v911, %v1202
        %v1204 = vpop.f32.mrb[0].mxu0
        %1205 = vmatprep.mubr.bf16.mxu0 0
        %1206 = vmatmul.mubr.bf16.gmra.mrb[0].mxu0 %v1063
        %v1207 = vpop.f32.mrb[0].mxu0
        %v1208 = vadd.f32 %v916, %v1207
        %v1209 = vpop.f32.mrb[0].mxu0
        %v1210 = vpop.f32.mrb[0].mxu0
        %v1211 = vadd.f32 %v919, %v1210
        %v1212 = vpop.f32.mrb[0].mxu0
        %1213 = vmatprep.mubr.bf16.mxu0 0
        %1214 = vmatmul.mubr.bf16.gmra.mrb[0].mxu0 %v1066
        %v1215 = vpop.f32.mrb[0].mxu0
        %v1216 = vadd.f32 %v924, %v1215
        %v1217 = vpop.f32.mrb[0].mxu0
        %v1218 = vpop.f32.mrb[0].mxu0
        %v1219 = vadd.f32 %v927, %v1218
        %v1220 = vpop.f32.mrb[0].mxu0
        %1221 = vmatprep.mubr.bf16.mxu0 0
        %1222 = vmatmul.mubr.bf16.gmra.mrb[0].mxu0 %v1069
        %v1223 = vpop.f32.mrb[0].mxu0
        %v1224 = vadd.f32 %v932, %v1223
        %v1225 = vpop.f32.mrb[0].mxu0
        %v1226 = vpop.f32.mrb[0].mxu0
        %v1227 = vadd.f32 %v935, %v1226
        %v1228 = vpop.f32.mrb[0].mxu0
        %1229 = vmatprep.mubr.bf16.mxu0 0
        %1230 = vmatmul.mubr.bf16.gmra.mrb[0].mxu0 %v1072
        %v1231 = vpop.f32.mrb[0].mxu0
        %v1232 = vadd.f32 %v940, %v1231
        %v1233 = vpop.f32.mrb[0].mxu0
        %v1234 = vpop.f32.mrb[0].mxu0
        %v1235 = vadd.f32 %v943, %v1234
        %v1236 = vpop.f32.mrb[0].mxu0
        %1237 = vdwg.mxu0
        %vm1254 = vcmask 1042432
        %vm1255 = vcmask 1046532
        %vm1256 = vmor %vm1254, %vm1255
        %v1257 = vrot.slane %v240, 5
        %v1258 = vrot.slane %v1257, 4
        %v1259 = vrot.slane %v241, 5
        %v1260 = vsel %vm1256, %v1258, %v1259
        %v1261 = vrot.slane %v1259, 4
        %v1262 = vrot.slane %v242, 5
        %v1263 = vsel %vm1256, %v1261, %v1262
        %v1264 = vrot.slane %v243, 5
        %v1265 = vrot.slane %v1264, 4
        %v1266 = vrot.slane %v244, 5
        %v1267 = vsel %vm1256, %v1265, %v1266
        %v1268 = vrot.slane %v1266, 4
        %v1269 = vrot.slane %v245, 5
        %v1270 = vsel %vm1256, %v1268, %v1269
        %v1271 = vrot.slane %v246, 5
        %v1272 = vrot.slane %v1271, 4
        %v1273 = vrot.slane %v247, 5
        %v1274 = vsel %vm1256, %v1272, %v1273
        %v1275 = vrot.slane %v1273, 4
        %v1276 = vrot.slane %v248, 5
        %v1277 = vsel %vm1256, %v1275, %v1276
        %v1278 = vrot.slane %v249, 5
        %v1279 = vrot.slane %v1278, 4
        %v1280 = vrot.slane %v250, 5
        %v1281 = vsel %vm1256, %v1279, %v1280
        %v1282 = vrot.slane %v1280, 4
        %v1283 = vrot.slane %v251, 5
        %v1284 = vsel %vm1256, %v1282, %v1283
        %v1285 = vrot.slane %v252, 5
        %v1286 = vrot.slane %v1285, 4
        %v1287 = vrot.slane %v253, 5
        %v1288 = vsel %vm1256, %v1286, %v1287
        %v1289 = vrot.slane %v1287, 4
        %v1290 = vrot.slane %v254, 5
        %v1291 = vsel %vm1256, %v1289, %v1290
        %v1292 = vrot.slane %v255, 5
        %v1293 = vrot.slane %v1292, 4
        %v1294 = vrot.slane %v256, 5
        %v1295 = vsel %vm1256, %v1293, %v1294
        %v1296 = vrot.slane %v1294, 4
        %v1297 = vrot.slane %v257, 5
        %v1298 = vsel %vm1256, %v1296, %v1297
        %v1299 = vrot.slane %v258, 5
        %v1300 = vrot.slane %v1299, 4
        %v1301 = vrot.slane %v259, 5
        %v1302 = vsel %vm1256, %v1300, %v1301
        %v1303 = vrot.slane %v1301, 4
        %v1304 = vrot.slane %v260, 5
        %v1305 = vsel %vm1256, %v1303, %v1304
        %v1306 = vrot.slane %v261, 5
        %v1307 = vrot.slane %v1306, 4
        %v1308 = vrot.slane %v262, 5
        %v1309 = vsel %vm1256, %v1307, %v1308
        %v1310 = vrot.slane %v1308, 4
        %v1311 = vrot.slane %v263, 5
        %v1312 = vsel %vm1256, %v1310, %v1311
        %v1313 = vrot.slane %v264, 5
        %v1314 = vrot.slane %v1313, 4
        %v1315 = vrot.slane %v265, 5
        %v1316 = vsel %vm1256, %v1314, %v1315
        %v1317 = vrot.slane %v1315, 4
        %v1318 = vrot.slane %v266, 5
        %v1319 = vsel %vm1256, %v1317, %v1318
        %v1320 = vrot.slane %v267, 5
        %v1321 = vrot.slane %v1320, 4
        %v1322 = vrot.slane %v268, 5
        %v1323 = vsel %vm1256, %v1321, %v1322
        %v1324 = vrot.slane %v1322, 4
        %v1325 = vrot.slane %v269, 5
        %v1326 = vsel %vm1256, %v1324, %v1325
        %v1327 = vrot.slane %v270, 5
        %v1328 = vrot.slane %v1327, 4
        %v1329 = vrot.slane %v271, 5
        %v1330 = vsel %vm1256, %v1328, %v1329
        %v1331 = vrot.slane %v1329, 4
        %v1332 = vrot.slane %v272, 5
        %v1333 = vsel %vm1256, %v1331, %v1332
        %v1334 = vrot.slane %v273, 5
        %v1335 = vrot.slane %v1334, 4
        %v1336 = vrot.slane %v274, 5
        %v1337 = vsel %vm1256, %v1335, %v1336
        %v1338 = vrot.slane %v1336, 4
        %v1339 = vrot.slane %v275, 5
        %v1340 = vsel %vm1256, %v1338, %v1339
        %v1341 = vrot.slane %v276, 5
        %v1342 = vrot.slane %v1341, 4
        %v1343 = vrot.slane %v277, 5
        %v1344 = vsel %vm1256, %v1342, %v1343
        %v1345 = vrot.slane %v1343, 4
        %v1346 = vrot.slane %v278, 5
        %v1347 = vsel %vm1256, %v1345, %v1346
        %v1348 = vrot.slane %v279, 5
        %v1349 = vrot.slane %v1348, 4
        %v1350 = vrot.slane %v280, 5
        %v1351 = vsel %vm1256, %v1349, %v1350
        %v1352 = vrot.slane %v1350, 4
        %v1353 = vrot.slane %v281, 5
        %v1354 = vsel %vm1256, %v1352, %v1353
        %v1355 = vrot.slane %v282, 5
        %v1356 = vrot.slane %v1355, 4
        %v1357 = vrot.slane %v283, 5
        %v1358 = vsel %vm1256, %v1356, %v1357
        %v1359 = vrot.slane %v1357, 4
        %v1360 = vrot.slane %v284, 5
        %v1361 = vsel %vm1256, %v1359, %v1360
        %v1362 = vrot.slane %v285, 5
        %v1363 = vrot.slane %v1362, 4
        %v1364 = vrot.slane %v286, 5
        %v1365 = vsel %vm1256, %v1363, %v1364
        %v1366 = vrot.slane %v1364, 4
        %v1367 = vrot.slane %v287, 5
        %v1368 = vsel %vm1256, %v1366, %v1367
        %s1369 = scalar_lea.vmem %s1, 4
        %v1370 = vld [vmem:[%s1369] sm:$0x3]
        %v1371 = vunpack.c.l.b16 %v1260
        %v1372 = vunpack.c.l.b16 %v1263
        %v1373 = vunpack.c.l.b16 %v1267
        %v1374 = vunpack.c.l.b16 %v1270
        %v1375 = vunpack.c.l.b16 %v1274
        %v1376 = vunpack.c.l.b16 %v1277
        %v1377 = vunpack.c.l.b16 %v1281
        %v1378 = vunpack.c.l.b16 %v1284
        %v1379 = vunpack.c.l.b16 %v1288
        %v1380 = vunpack.c.l.b16 %v1291
        %v1381 = vunpack.c.l.b16 %v1295
        %v1382 = vunpack.c.l.b16 %v1298
        %v1383 = vunpack.c.l.b16 %v1302
        %v1384 = vunpack.c.l.b16 %v1305
        %v1385 = vunpack.c.l.b16 %v1309
        %v1386 = vunpack.c.l.b16 %v1312
        %v1387 = vunpack.c.l.b16 %v1316
        %v1388 = vunpack.c.l.b16 %v1319
        %v1389 = vunpack.c.l.b16 %v1323
        %v1390 = vunpack.c.l.b16 %v1326
        %v1391 = vunpack.c.l.b16 %v1330
        %v1392 = vunpack.c.l.b16 %v1333
        %v1393 = vunpack.c.l.b16 %v1337
        %v1394 = vunpack.c.l.b16 %v1340
        %v1395 = vunpack.c.l.b16 %v1344
        %v1396 = vunpack.c.l.b16 %v1347
        %v1397 = vunpack.c.l.b16 %v1351
        %v1398 = vunpack.c.l.b16 %v1354
        %v1399 = vunpack.c.l.b16 %v1358
        %v1400 = vunpack.c.l.b16 %v1361
        %v1401 = vunpack.c.l.b16 %v1365
        %v1402 = vunpack.c.l.b16 %v1368
        %v1403 = vpack.c.b16 %v1372, %v1371
        %v1404 = vpack.c.b16 %v1374, %v1373
        %v1405 = vpack.c.b16 %v1376, %v1375
        %v1406 = vpack.c.b16 %v1378, %v1377
        %v1407 = vpack.c.b16 %v1380, %v1379
        %v1408 = vpack.c.b16 %v1382, %v1381
        %v1409 = vpack.c.b16 %v1384, %v1383
        %v1410 = vpack.c.b16 %v1386, %v1385
        %v1411 = vpack.c.b16 %v1388, %v1387
        %v1412 = vpack.c.b16 %v1390, %v1389
        %v1413 = vpack.c.b16 %v1392, %v1391
        %v1414 = vpack.c.b16 %v1394, %v1393
        %v1415 = vpack.c.b16 %v1396, %v1395
        %v1416 = vpack.c.b16 %v1398, %v1397
        %v1417 = vpack.c.b16 %v1400, %v1399
        %v1418 = vpack.c.b16 %v1402, %v1401
        %v1420 = vsel %vm732, %v1403, 0
        %v1423 = vsel %vm732, %v1404, 0
        %v1426 = vsel %vm732, %v1405, 0
        %v1429 = vsel %vm732, %v1406, 0
        %v1432 = vsel %vm732, %v1407, 0
        %v1435 = vsel %vm732, %v1408, 0
        %v1438 = vsel %vm732, %v1409, 0
        %v1441 = vsel %vm732, %v1410, 0
        %v1444 = vsel %vm732, %v1411, 0
        %v1447 = vsel %vm732, %v1412, 0
        %v1450 = vsel %vm732, %v1413, 0
        %v1453 = vsel %vm732, %v1414, 0
        %v1456 = vsel %vm732, %v1415, 0
        %v1459 = vsel %vm732, %v1416, 0
        %v1462 = vsel %vm732, %v1417, 0
        %v1465 = vsel %vm732, %v1418, 0
        %v1468 = vsel %vm781, %v1370, 0
        %1470 = vmatprep.subr.bf16.mxu0 0
        %1471 = vmatpush1.bf16.msra.mxu0 %v1468
        %1472 = vmatprep.subr.bf16.mxu0 0
        %1473 = vmatpush1.bf16.msra.mxu0 0
        %1474 = vmatprep.subr.bf16.mxu0 0
        %1475 = vmatpush1.bf16.msra.mxu0 0
        %1476 = vmatprep.subr.bf16.mxu0 0
        %1477 = vmatpush1.bf16.msra.mxu0 0
        %1478 = vmatprep.subr.bf16.mxu0 0
        %1479 = vmatpush1.bf16.msra.mxu0 0
        %1480 = vmatprep.subr.bf16.mxu0 0
        %1481 = vmatpush1.bf16.msra.mxu0 0
        %1482 = vmatprep.subr.bf16.mxu0 0
        %1483 = vmatpush1.bf16.msra.mxu0 0
        %1484 = vmatprep.subr.bf16.mxu0 0
        %1485 = vmatpush1.bf16.msra.mxu0 0
        %1486 = vmatprep.subr.bf16.mxu0 0
        %1487 = vmatpush1.bf16.msra.mxu0 0
        %1488 = vmatprep.subr.bf16.mxu0 0
        %1489 = vmatpush1.bf16.msra.mxu0 0
        %1490 = vmatprep.subr.bf16.mxu0 0
        %1491 = vmatpush1.bf16.msra.mxu0 0
        %1492 = vmatprep.subr.bf16.mxu0 0
        %1493 = vmatpush1.bf16.msra.mxu0 0
        %1494 = vmatprep.subr.bf16.mxu0 0
        %1495 = vmatpush1.bf16.msra.mxu0 0
        %1496 = vmatprep.subr.bf16.mxu0 0
        %1497 = vmatpush1.bf16.msra.mxu0 0
        %1498 = vmatprep.subr.bf16.mxu0 0
        %1499 = vmatpush1.bf16.msra.mxu0 0
        %1500 = vmatprep.subr.bf16.mxu0 0
        %1501 = vmatpush1.bf16.msra.mxu0 0
        %1502 = vmatprep.mubr.bf16.mxu0 0
        %1503 = vmatmul.mubr.bf16.gmra.mrb[0].mxu0 %v1420
        %v1504 = vpop.f32.mrb[0].mxu0
        %v1505 = vadd.f32 0.0, %v1504
        %v1506 = vpop.f32.mrb[0].mxu0
        %v1507 = vpop.f32.mrb[0].mxu0
        %v1508 = vadd.f32 0.0, %v1507
        %v1509 = vpop.f32.mrb[0].mxu0
        %1510 = vmatprep.mubr.bf16.mxu0 0
        %1511 = vmatmul.mubr.bf16.gmra.mrb[0].mxu0 %v1423
        %v1512 = vpop.f32.mrb[0].mxu0
        %v1513 = vadd.f32 0.0, %v1512
        %v1514 = vpop.f32.mrb[0].mxu0
        %v1515 = vpop.f32.mrb[0].mxu0
        %v1516 = vadd.f32 0.0, %v1515
        %v1517 = vpop.f32.mrb[0].mxu0
        %1518 = vmatprep.mubr.bf16.mxu0 0
        %1519 = vmatmul.mubr.bf16.gmra.mrb[0].mxu0 %v1426
        %v1520 = vpop.f32.mrb[0].mxu0
        %v1521 = vadd.f32 0.0, %v1520
        %v1522 = vpop.f32.mrb[0].mxu0
        %v1523 = vpop.f32.mrb[0].mxu0
        %v1524 = vadd.f32 0.0, %v1523
        %v1525 = vpop.f32.mrb[0].mxu0
        %1526 = vmatprep.mubr.bf16.mxu0 0
        %1527 = vmatmul.mubr.bf16.gmra.mrb[0].mxu0 %v1429
        %v1528 = vpop.f32.mrb[0].mxu0
        %v1529 = vadd.f32 0.0, %v1528
        %v1530 = vpop.f32.mrb[0].mxu0
        %v1531 = vpop.f32.mrb[0].mxu0
        %v1532 = vadd.f32 0.0, %v1531
        %v1533 = vpop.f32.mrb[0].mxu0
        %1534 = vmatprep.mubr.bf16.mxu0 0
        %1535 = vmatmul.mubr.bf16.gmra.mrb[0].mxu0 %v1432
        %v1536 = vpop.f32.mrb[0].mxu0
        %v1537 = vadd.f32 0.0, %v1536
        %v1538 = vpop.f32.mrb[0].mxu0
        %v1539 = vpop.f32.mrb[0].mxu0
        %v1540 = vadd.f32 0.0, %v1539
        %v1541 = vpop.f32.mrb[0].mxu0
        %1542 = vmatprep.mubr.bf16.mxu0 0
        %1543 = vmatmul.mubr.bf16.gmra.mrb[0].mxu0 %v1435
        %v1544 = vpop.f32.mrb[0].mxu0
        %v1545 = vadd.f32 0.0, %v1544
        %v1546 = vpop.f32.mrb[0].mxu0
        %v1547 = vpop.f32.mrb[0].mxu0
        %v1548 = vadd.f32 0.0, %v1547
        %v1549 = vpop.f32.mrb[0].mxu0
        %1550 = vmatprep.mubr.bf16.mxu0 0
        %1551 = vmatmul.mubr.bf16.gmra.mrb[0].mxu0 %v1438
        %v1552 = vpop.f32.mrb[0].mxu0
        %v1553 = vadd.f32 0.0, %v1552
        %v1554 = vpop.f32.mrb[0].mxu0
        %v1555 = vpop.f32.mrb[0].mxu0
        %v1556 = vadd.f32 0.0, %v1555
        %v1557 = vpop.f32.mrb[0].mxu0
        %1558 = vmatprep.mubr.bf16.mxu0 0
        %1559 = vmatmul.mubr.bf16.gmra.mrb[0].mxu0 %v1441
        %v1560 = vpop.f32.mrb[0].mxu0
        %v1561 = vadd.f32 0.0, %v1560
        %v1562 = vpop.f32.mrb[0].mxu0
        %v1563 = vpop.f32.mrb[0].mxu0
        %v1564 = vadd.f32 0.0, %v1563
        %v1565 = vpop.f32.mrb[0].mxu0
        %1566 = vmatprep.mubr.bf16.mxu0 0
        %1567 = vmatmul.mubr.bf16.gmra.mrb[0].mxu0 %v1444
        %v1568 = vpop.f32.mrb[0].mxu0
        %v1569 = vadd.f32 0.0, %v1568
        %v1570 = vpop.f32.mrb[0].mxu0
        %v1571 = vpop.f32.mrb[0].mxu0
        %v1572 = vadd.f32 0.0, %v1571
        %v1573 = vpop.f32.mrb[0].mxu0
        %1574 = vmatprep.mubr.bf16.mxu0 0
        %1575 = vmatmul.mubr.bf16.gmra.mrb[0].mxu0 %v1447
        %v1576 = vpop.f32.mrb[0].mxu0
        %v1577 = vadd.f32 0.0, %v1576
        %v1578 = vpop.f32.mrb[0].mxu0
        %v1579 = vpop.f32.mrb[0].mxu0
        %v1580 = vadd.f32 0.0, %v1579
        %v1581 = vpop.f32.mrb[0].mxu0
        %1582 = vmatprep.mubr.bf16.mxu0 0
        %1583 = vmatmul.mubr.bf16.gmra.mrb[0].mxu0 %v1450
        %v1584 = vpop.f32.mrb[0].mxu0
        %v1585 = vadd.f32 0.0, %v1584
        %v1586 = vpop.f32.mrb[0].mxu0
        %v1587 = vpop.f32.mrb[0].mxu0
        %v1588 = vadd.f32 0.0, %v1587
        %v1589 = vpop.f32.mrb[0].mxu0
        %1590 = vmatprep.mubr.bf16.mxu0 0
        %1591 = vmatmul.mubr.bf16.gmra.mrb[0].mxu0 %v1453
        %v1592 = vpop.f32.mrb[0].mxu0
        %v1593 = vadd.f32 0.0, %v1592
        %v1594 = vpop.f32.mrb[0].mxu0
        %v1595 = vpop.f32.mrb[0].mxu0
        %v1596 = vadd.f32 0.0, %v1595
        %v1597 = vpop.f32.mrb[0].mxu0
        %1598 = vmatprep.mubr.bf16.mxu0 0
        %1599 = vmatmul.mubr.bf16.gmra.mrb[0].mxu0 %v1456
        %v1600 = vpop.f32.mrb[0].mxu0
        %v1601 = vadd.f32 0.0, %v1600
        %v1602 = vpop.f32.mrb[0].mxu0
        %v1603 = vpop.f32.mrb[0].mxu0
        %v1604 = vadd.f32 0.0, %v1603
        %v1605 = vpop.f32.mrb[0].mxu0
        %1606 = vmatprep.mubr.bf16.mxu0 0
        %1607 = vmatmul.mubr.bf16.gmra.mrb[0].mxu0 %v1459
        %v1608 = vpop.f32.mrb[0].mxu0
        %v1609 = vadd.f32 0.0, %v1608
        %v1610 = vpop.f32.mrb[0].mxu0
        %v1611 = vpop.f32.mrb[0].mxu0
        %v1612 = vadd.f32 0.0, %v1611
        %v1613 = vpop.f32.mrb[0].mxu0
        %1614 = vmatprep.mubr.bf16.mxu0 0
        %1615 = vmatmul.mubr.bf16.gmra.mrb[0].mxu0 %v1462
        %v1616 = vpop.f32.mrb[0].mxu0
        %v1617 = vadd.f32 0.0, %v1616
        %v1618 = vpop.f32.mrb[0].mxu0
        %v1619 = vpop.f32.mrb[0].mxu0
        %v1620 = vadd.f32 0.0, %v1619
        %v1621 = vpop.f32.mrb[0].mxu0
        %1622 = vmatprep.mubr.bf16.mxu0 0
        %1623 = vmatmul.mubr.bf16.gmra.mrb[0].mxu0 %v1465
        %v1624 = vpop.f32.mrb[0].mxu0
        %v1625 = vadd.f32 0.0, %v1624
        %v1626 = vpop.f32.mrb[0].mxu0
        %v1627 = vpop.f32.mrb[0].mxu0
        %v1628 = vadd.f32 0.0, %v1627
        %v1629 = vpop.f32.mrb[0].mxu0
        %1630 = vdwg.mxu0
        %v1631 = vadd.f32 %v1112, %v1505
        %v1632 = vadd.f32 %v1115, %v1508
        %v1633 = vadd.f32 %v1120, %v1513
        %v1634 = vadd.f32 %v1123, %v1516
        %v1635 = vadd.f32 %v1128, %v1521
        %v1636 = vadd.f32 %v1131, %v1524
        %v1637 = vadd.f32 %v1136, %v1529
        %v1638 = vadd.f32 %v1139, %v1532
        %v1639 = vadd.f32 %v1144, %v1537
        %v1640 = vadd.f32 %v1147, %v1540
        %v1641 = vadd.f32 %v1152, %v1545
        %v1642 = vadd.f32 %v1155, %v1548
        %v1643 = vadd.f32 %v1160, %v1553
        %v1644 = vadd.f32 %v1163, %v1556
        %v1645 = vadd.f32 %v1168, %v1561
        %v1646 = vadd.f32 %v1171, %v1564
        %v1647 = vadd.f32 %v1176, %v1569
        %v1648 = vadd.f32 %v1179, %v1572
        %v1649 = vadd.f32 %v1184, %v1577
        %v1650 = vadd.f32 %v1187, %v1580
        %v1651 = vadd.f32 %v1192, %v1585
        %v1652 = vadd.f32 %v1195, %v1588
        %v1653 = vadd.f32 %v1200, %v1593
        %v1654 = vadd.f32 %v1203, %v1596
        %v1655 = vadd.f32 %v1208, %v1601
        %v1656 = vadd.f32 %v1211, %v1604
        %v1657 = vadd.f32 %v1216, %v1609
        %v1658 = vadd.f32 %v1219, %v1612
        %v1659 = vadd.f32 %v1224, %v1617
        %v1660 = vadd.f32 %v1227, %v1620
        %v1661 = vadd.f32 %v1232, %v1625
        %v1662 = vadd.f32 %v1235, %v1628
        %s1663 = scalar_lea.vmem %s1, 6
        %v1664 = vld [vmem:[%s1663] sm:$0x3]
        %v1667 = vunpack.c.l.b16 %v288
        %v1668 = vunpack.c.l.b16 %v289
        %v1669 = vpack.c.b16 %v1668, %v1667
        %v1671 = vsel %vm732, %v1669, 0
        %v1674 = vsel %vm781, %v1664, 0
        %1676 = vmatprep.subr.bf16.mxu0 0
        %1677 = vmatpush1.bf16.msra.mxu0 %v1674
        %1678 = vmatprep.subr.bf16.mxu0 0
        %1679 = vmatpush1.bf16.msra.mxu0 0
        %1680 = vmatprep.subr.bf16.mxu0 0
        %1681 = vmatpush1.bf16.msra.mxu0 0
        %1682 = vmatprep.subr.bf16.mxu0 0
        %1683 = vmatpush1.bf16.msra.mxu0 0
        %1684 = vmatprep.subr.bf16.mxu0 0
        %1685 = vmatpush1.bf16.msra.mxu0 0
        %1686 = vmatprep.subr.bf16.mxu0 0
        %1687 = vmatpush1.bf16.msra.mxu0 0
        %1688 = vmatprep.subr.bf16.mxu0 0
        %1689 = vmatpush1.bf16.msra.mxu0 0
        %1690 = vmatprep.subr.bf16.mxu0 0
        %1691 = vmatpush1.bf16.msra.mxu0 0
        %1692 = vmatprep.subr.bf16.mxu0 0
        %1693 = vmatpush1.bf16.msra.mxu0 0
        %1694 = vmatprep.subr.bf16.mxu0 0
        %1695 = vmatpush1.bf16.msra.mxu0 0
        %1696 = vmatprep.subr.bf16.mxu0 0
        %1697 = vmatpush1.bf16.msra.mxu0 0
        %1698 = vmatprep.subr.bf16.mxu0 0
        %1699 = vmatpush1.bf16.msra.mxu0 0
        %1700 = vmatprep.subr.bf16.mxu0 0
        %1701 = vmatpush1.bf16.msra.mxu0 0
        %1702 = vmatprep.subr.bf16.mxu0 0
        %1703 = vmatpush1.bf16.msra.mxu0 0
        %1704 = vmatprep.subr.bf16.mxu0 0
        %1705 = vmatpush1.bf16.msra.mxu0 0
        %1706 = vmatprep.subr.bf16.mxu0 0
        %1707 = vmatpush1.bf16.msra.mxu0 0
        %1708 = vmatprep.mubr.bf16.mxu0 0
        %1709 = vmatmul.mubr.bf16.gmra.mrb[0].mxu0 %v1030
        %v1710 = vpop.f32.mrb[0].mxu0
        %v1711 = vadd.f32 0.0, %v1710
        %v1712 = vpop.f32.mrb[0].mxu0
        %v1713 = vpop.f32.mrb[0].mxu0
        %v1714 = vadd.f32 0.0, %v1713
        %v1715 = vpop.f32.mrb[0].mxu0
        %1716 = vmatprep.mubr.bf16.mxu0 0
        %1717 = vmatmul.mubr.bf16.gmra.mrb[0].mxu0 %v1033
        %v1718 = vpop.f32.mrb[0].mxu0
        %v1719 = vadd.f32 0.0, %v1718
        %v1720 = vpop.f32.mrb[0].mxu0
        %v1721 = vpop.f32.mrb[0].mxu0
        %v1722 = vadd.f32 0.0, %v1721
        %v1723 = vpop.f32.mrb[0].mxu0
        %1724 = vmatprep.mubr.bf16.mxu0 0
        %1725 = vmatmul.mubr.bf16.gmra.mrb[0].mxu0 %v1036
        %v1726 = vpop.f32.mrb[0].mxu0
        %v1727 = vadd.f32 0.0, %v1726
        %v1728 = vpop.f32.mrb[0].mxu0
        %v1729 = vpop.f32.mrb[0].mxu0
        %v1730 = vadd.f32 0.0, %v1729
        %v1731 = vpop.f32.mrb[0].mxu0
        %1732 = vmatprep.mubr.bf16.mxu0 0
        %1733 = vmatmul.mubr.bf16.gmra.mrb[0].mxu0 %v1039
        %v1734 = vpop.f32.mrb[0].mxu0
        %v1735 = vadd.f32 0.0, %v1734
        %v1736 = vpop.f32.mrb[0].mxu0
        %v1737 = vpop.f32.mrb[0].mxu0
        %v1738 = vadd.f32 0.0, %v1737
        %v1739 = vpop.f32.mrb[0].mxu0
        %1740 = vmatprep.mubr.bf16.mxu0 0
        %1741 = vmatmul.mubr.bf16.gmra.mrb[0].mxu0 %v1042
        %v1742 = vpop.f32.mrb[0].mxu0
        %v1743 = vadd.f32 0.0, %v1742
        %v1744 = vpop.f32.mrb[0].mxu0
        %v1745 = vpop.f32.mrb[0].mxu0
        %v1746 = vadd.f32 0.0, %v1745
        %v1747 = vpop.f32.mrb[0].mxu0
        %1748 = vmatprep.mubr.bf16.mxu0 0
        %1749 = vmatmul.mubr.bf16.gmra.mrb[0].mxu0 %v1045
        %v1750 = vpop.f32.mrb[0].mxu0
        %v1751 = vadd.f32 0.0, %v1750
        %v1752 = vpop.f32.mrb[0].mxu0
        %v1753 = vpop.f32.mrb[0].mxu0
        %v1754 = vadd.f32 0.0, %v1753
        %v1755 = vpop.f32.mrb[0].mxu0
        %1756 = vmatprep.mubr.bf16.mxu0 0
        %1757 = vmatmul.mubr.bf16.gmra.mrb[0].mxu0 %v1048
        %v1758 = vpop.f32.mrb[0].mxu0
        %v1759 = vadd.f32 0.0, %v1758
        %v1760 = vpop.f32.mrb[0].mxu0
        %v1761 = vpop.f32.mrb[0].mxu0
        %v1762 = vadd.f32 0.0, %v1761
        %v1763 = vpop.f32.mrb[0].mxu0
        %1764 = vmatprep.mubr.bf16.mxu0 0
        %1765 = vmatmul.mubr.bf16.gmra.mrb[0].mxu0 %v1051
        %v1766 = vpop.f32.mrb[0].mxu0
        %v1767 = vadd.f32 0.0, %v1766
        %v1768 = vpop.f32.mrb[0].mxu0
        %v1769 = vpop.f32.mrb[0].mxu0
        %v1770 = vadd.f32 0.0, %v1769
        %v1771 = vpop.f32.mrb[0].mxu0
        %1772 = vmatprep.mubr.bf16.mxu0 0
        %1773 = vmatmul.mubr.bf16.gmra.mrb[0].mxu0 %v1054
        %v1774 = vpop.f32.mrb[0].mxu0
        %v1775 = vadd.f32 0.0, %v1774
        %v1776 = vpop.f32.mrb[0].mxu0
        %v1777 = vpop.f32.mrb[0].mxu0
        %v1778 = vadd.f32 0.0, %v1777
        %v1779 = vpop.f32.mrb[0].mxu0
        %1780 = vmatprep.mubr.bf16.mxu0 0
        %1781 = vmatmul.mubr.bf16.gmra.mrb[0].mxu0 %v1057
        %v1782 = vpop.f32.mrb[0].mxu0
        %v1783 = vadd.f32 0.0, %v1782
        %v1784 = vpop.f32.mrb[0].mxu0
        %v1785 = vpop.f32.mrb[0].mxu0
        %v1786 = vadd.f32 0.0, %v1785
        %v1787 = vpop.f32.mrb[0].mxu0
        %1788 = vmatprep.mubr.bf16.mxu0 0
        %1789 = vmatmul.mubr.bf16.gmra.mrb[0].mxu0 %v1060
        %v1790 = vpop.f32.mrb[0].mxu0
        %v1791 = vadd.f32 0.0, %v1790
        %v1792 = vpop.f32.mrb[0].mxu0
        %v1793 = vpop.f32.mrb[0].mxu0
        %v1794 = vadd.f32 0.0, %v1793
        %v1795 = vpop.f32.mrb[0].mxu0
        %1796 = vmatprep.mubr.bf16.mxu0 0
        %1797 = vmatmul.mubr.bf16.gmra.mrb[0].mxu0 %v1063
        %v1798 = vpop.f32.mrb[0].mxu0
        %v1799 = vadd.f32 0.0, %v1798
        %v1800 = vpop.f32.mrb[0].mxu0
        %v1801 = vpop.f32.mrb[0].mxu0
        %v1802 = vadd.f32 0.0, %v1801
        %v1803 = vpop.f32.mrb[0].mxu0
        %1804 = vmatprep.mubr.bf16.mxu0 0
        %1805 = vmatmul.mubr.bf16.gmra.mrb[0].mxu0 %v1066
        %v1806 = vpop.f32.mrb[0].mxu0
        %v1807 = vadd.f32 0.0, %v1806
        %v1808 = vpop.f32.mrb[0].mxu0
        %v1809 = vpop.f32.mrb[0].mxu0
        %v1810 = vadd.f32 0.0, %v1809
        %v1811 = vpop.f32.mrb[0].mxu0
        %1812 = vmatprep.mubr.bf16.mxu0 0
        %1813 = vmatmul.mubr.bf16.gmra.mrb[0].mxu0 %v1069
        %v1814 = vpop.f32.mrb[0].mxu0
        %v1815 = vadd.f32 0.0, %v1814
        %v1816 = vpop.f32.mrb[0].mxu0
        %v1817 = vpop.f32.mrb[0].mxu0
        %v1818 = vadd.f32 0.0, %v1817
        %v1819 = vpop.f32.mrb[0].mxu0
        %1820 = vmatprep.mubr.bf16.mxu0 0
        %1821 = vmatmul.mubr.bf16.gmra.mrb[0].mxu0 %v1072
        %v1822 = vpop.f32.mrb[0].mxu0
        %v1823 = vadd.f32 0.0, %v1822
        %v1824 = vpop.f32.mrb[0].mxu0
        %v1825 = vpop.f32.mrb[0].mxu0
        %v1826 = vadd.f32 0.0, %v1825
        %v1827 = vpop.f32.mrb[0].mxu0
        %1828 = vmatprep.mubr.bf16.mxu0 0
        %1829 = vmatmul.mubr.bf16.gmra.mrb[0].mxu0 %v1671
        %v1830 = vpop.f32.mrb[0].mxu0
        %v1831 = vadd.f32 0.0, %v1830
        %v1832 = vpop.f32.mrb[0].mxu0
        %v1833 = vpop.f32.mrb[0].mxu0
        %v1834 = vadd.f32 0.0, %v1833
        %v1835 = vpop.f32.mrb[0].mxu0
        %1836 = vdwg.mxu0
        %v1837 = vadd.f32 %v1631, %v1711
        %v1838 = vadd.f32 %v1632, %v1714
        %v1839 = vadd.f32 %v1633, %v1719
        %v1840 = vadd.f32 %v1634, %v1722
        %v1841 = vadd.f32 %v1635, %v1727
        %v1842 = vadd.f32 %v1636, %v1730
        %v1843 = vadd.f32 %v1637, %v1735
        %v1844 = vadd.f32 %v1638, %v1738
        %v1845 = vadd.f32 %v1639, %v1743
        %v1846 = vadd.f32 %v1640, %v1746
        %v1847 = vadd.f32 %v1641, %v1751
        %v1848 = vadd.f32 %v1642, %v1754
        %v1849 = vadd.f32 %v1643, %v1759
        %v1850 = vadd.f32 %v1644, %v1762
        %v1851 = vadd.f32 %v1645, %v1767
        %v1852 = vadd.f32 %v1646, %v1770
        %v1853 = vadd.f32 %v1647, %v1775
        %v1854 = vadd.f32 %v1648, %v1778
        %v1855 = vadd.f32 %v1649, %v1783
        %v1856 = vadd.f32 %v1650, %v1786
        %v1857 = vadd.f32 %v1651, %v1791
        %v1858 = vadd.f32 %v1652, %v1794
        %v1859 = vadd.f32 %v1653, %v1799
        %v1860 = vadd.f32 %v1654, %v1802
        %v1861 = vadd.f32 %v1655, %v1807
        %v1862 = vadd.f32 %v1656, %v1810
        %v1863 = vadd.f32 %v1657, %v1815
        %v1864 = vadd.f32 %v1658, %v1818
        %v1865 = vadd.f32 %v1659, %v1823
        %v1866 = vadd.f32 %v1660, %v1826
        %v1867 = vadd.f32 %v1661, %v1831
        %v1868 = vadd.f32 %v1662, %v1834
        %v1870 = vshrl.u32 %v288, 16
        %v1872 = vrot.slane %v1870, 4
        %v1873 = vshll.u32 %v288, 16
        %v1875 = vrot.slane %v1873, 5
        %v1876 = vor.u32 %v1872, %v1875
        %v1877 = vrot.slane %v1876, 4
        %v1879 = vshll.u32 %v289, 16
        %v1881 = vrot.slane %v1879, 5
        %v1882 = vsel %vm297, %v1877, %v1881
        %v1883 = vshrl.u32 %v289, 16
        %v1885 = vrot.slane %v1883, 4
        %v1886 = vor.u32 %v1885, %v1881
        %v1887 = vrot.slane %v1886, 4
        %v1889 = vshll.u32 %v290, 16
        %v1891 = vrot.slane %v1889, 5
        %v1892 = vsel %vm297, %v1887, %v1891
        %s1893 = scalar_lea.vmem %s1, 8
        %v1894 = vld [vmem:[%s1893] sm:$0x3]
        %v1895 = vunpack.c.l.b16 %v1882
        %v1896 = vunpack.c.l.b16 %v1892
        %v1897 = vpack.c.b16 %v1896, %v1895
        %v1899 = vsel %vm732, %v1897, 0
        %v1902 = vsel %vm781, %v1894, 0
        %1904 = vmatprep.subr.bf16.mxu0 0
        %1905 = vmatpush1.bf16.msra.mxu0 %v1902
        %1906 = vmatprep.subr.bf16.mxu0 0
        %1907 = vmatpush1.bf16.msra.mxu0 0
        %1908 = vmatprep.subr.bf16.mxu0 0
        %1909 = vmatpush1.bf16.msra.mxu0 0
        %1910 = vmatprep.subr.bf16.mxu0 0
        %1911 = vmatpush1.bf16.msra.mxu0 0
        %1912 = vmatprep.subr.bf16.mxu0 0
        %1913 = vmatpush1.bf16.msra.mxu0 0
        %1914 = vmatprep.subr.bf16.mxu0 0
        %1915 = vmatpush1.bf16.msra.mxu0 0
        %1916 = vmatprep.subr.bf16.mxu0 0
        %1917 = vmatpush1.bf16.msra.mxu0 0
        %1918 = vmatprep.subr.bf16.mxu0 0
        %1919 = vmatpush1.bf16.msra.mxu0 0
        %1920 = vmatprep.subr.bf16.mxu0 0
        %1921 = vmatpush1.bf16.msra.mxu0 0
        %1922 = vmatprep.subr.bf16.mxu0 0
        %1923 = vmatpush1.bf16.msra.mxu0 0
        %1924 = vmatprep.subr.bf16.mxu0 0
        %1925 = vmatpush1.bf16.msra.mxu0 0
        %1926 = vmatprep.subr.bf16.mxu0 0
        %1927 = vmatpush1.bf16.msra.mxu0 0
        %1928 = vmatprep.subr.bf16.mxu0 0
        %1929 = vmatpush1.bf16.msra.mxu0 0
        %1930 = vmatprep.subr.bf16.mxu0 0
        %1931 = vmatpush1.bf16.msra.mxu0 0
        %1932 = vmatprep.subr.bf16.mxu0 0
        %1933 = vmatpush1.bf16.msra.mxu0 0
        %1934 = vmatprep.subr.bf16.mxu0 0
        %1935 = vmatpush1.bf16.msra.mxu0 0
        %1936 = vmatprep.mubr.bf16.mxu0 0
        %1937 = vmatmul.mubr.bf16.gmra.mrb[0].mxu0 %v737
        %v1938 = vpop.f32.mrb[0].mxu0
        %v1939 = vadd.f32 0.0, %v1938
        %v1940 = vpop.f32.mrb[0].mxu0
        %v1941 = vpop.f32.mrb[0].mxu0
        %v1942 = vadd.f32 0.0, %v1941
        %v1943 = vpop.f32.mrb[0].mxu0
        %1944 = vmatprep.mubr.bf16.mxu0 0
        %1945 = vmatmul.mubr.bf16.gmra.mrb[0].mxu0 %v740
        %v1946 = vpop.f32.mrb[0].mxu0
        %v1947 = vadd.f32 0.0, %v1946
        %v1948 = vpop.f32.mrb[0].mxu0
        %v1949 = vpop.f32.mrb[0].mxu0
        %v1950 = vadd.f32 0.0, %v1949
        %v1951 = vpop.f32.mrb[0].mxu0
        %1952 = vmatprep.mubr.bf16.mxu0 0
        %1953 = vmatmul.mubr.bf16.gmra.mrb[0].mxu0 %v743
        %v1954 = vpop.f32.mrb[0].mxu0
        %v1955 = vadd.f32 0.0, %v1954
        %v1956 = vpop.f32.mrb[0].mxu0
        %v1957 = vpop.f32.mrb[0].mxu0
        %v1958 = vadd.f32 0.0, %v1957
        %v1959 = vpop.f32.mrb[0].mxu0
        %1960 = vmatprep.mubr.bf16.mxu0 0
        %1961 = vmatmul.mubr.bf16.gmra.mrb[0].mxu0 %v746
        %v1962 = vpop.f32.mrb[0].mxu0
        %v1963 = vadd.f32 0.0, %v1962
        %v1964 = vpop.f32.mrb[0].mxu0
        %v1965 = vpop.f32.mrb[0].mxu0
        %v1966 = vadd.f32 0.0, %v1965
        %v1967 = vpop.f32.mrb[0].mxu0
        %1968 = vmatprep.mubr.bf16.mxu0 0
        %1969 = vmatmul.mubr.bf16.gmra.mrb[0].mxu0 %v749
        %v1970 = vpop.f32.mrb[0].mxu0
        %v1971 = vadd.f32 0.0, %v1970
        %v1972 = vpop.f32.mrb[0].mxu0
        %v1973 = vpop.f32.mrb[0].mxu0
        %v1974 = vadd.f32 0.0, %v1973
        %v1975 = vpop.f32.mrb[0].mxu0
        %1976 = vmatprep.mubr.bf16.mxu0 0
        %1977 = vmatmul.mubr.bf16.gmra.mrb[0].mxu0 %v752
        %v1978 = vpop.f32.mrb[0].mxu0
        %v1979 = vadd.f32 0.0, %v1978
        %v1980 = vpop.f32.mrb[0].mxu0
        %v1981 = vpop.f32.mrb[0].mxu0
        %v1982 = vadd.f32 0.0, %v1981
        %v1983 = vpop.f32.mrb[0].mxu0
        %1984 = vmatprep.mubr.bf16.mxu0 0
        %1985 = vmatmul.mubr.bf16.gmra.mrb[0].mxu0 %v755
        %v1986 = vpop.f32.mrb[0].mxu0
        %v1987 = vadd.f32 0.0, %v1986
        %v1988 = vpop.f32.mrb[0].mxu0
        %v1989 = vpop.f32.mrb[0].mxu0
        %v1990 = vadd.f32 0.0, %v1989
        %v1991 = vpop.f32.mrb[0].mxu0
        %1992 = vmatprep.mubr.bf16.mxu0 0
        %1993 = vmatmul.mubr.bf16.gmra.mrb[0].mxu0 %v758
        %v1994 = vpop.f32.mrb[0].mxu0
        %v1995 = vadd.f32 0.0, %v1994
        %v1996 = vpop.f32.mrb[0].mxu0
        %v1997 = vpop.f32.mrb[0].mxu0
        %v1998 = vadd.f32 0.0, %v1997
        %v1999 = vpop.f32.mrb[0].mxu0
        %2000 = vmatprep.mubr.bf16.mxu0 0
        %2001 = vmatmul.mubr.bf16.gmra.mrb[0].mxu0 %v761
        %v2002 = vpop.f32.mrb[0].mxu0
        %v2003 = vadd.f32 0.0, %v2002
        %v2004 = vpop.f32.mrb[0].mxu0
        %v2005 = vpop.f32.mrb[0].mxu0
        %v2006 = vadd.f32 0.0, %v2005
        %v2007 = vpop.f32.mrb[0].mxu0
        %2008 = vmatprep.mubr.bf16.mxu0 0
        %2009 = vmatmul.mubr.bf16.gmra.mrb[0].mxu0 %v764
        %v2010 = vpop.f32.mrb[0].mxu0
        %v2011 = vadd.f32 0.0, %v2010
        %v2012 = vpop.f32.mrb[0].mxu0
        %v2013 = vpop.f32.mrb[0].mxu0
        %v2014 = vadd.f32 0.0, %v2013
        %v2015 = vpop.f32.mrb[0].mxu0
        %2016 = vmatprep.mubr.bf16.mxu0 0
        %2017 = vmatmul.mubr.bf16.gmra.mrb[0].mxu0 %v767
        %v2018 = vpop.f32.mrb[0].mxu0
        %v2019 = vadd.f32 0.0, %v2018
        %v2020 = vpop.f32.mrb[0].mxu0
        %v2021 = vpop.f32.mrb[0].mxu0
        %v2022 = vadd.f32 0.0, %v2021
        %v2023 = vpop.f32.mrb[0].mxu0
        %2024 = vmatprep.mubr.bf16.mxu0 0
        %2025 = vmatmul.mubr.bf16.gmra.mrb[0].mxu0 %v770
        %v2026 = vpop.f32.mrb[0].mxu0
        %v2027 = vadd.f32 0.0, %v2026
        %v2028 = vpop.f32.mrb[0].mxu0
        %v2029 = vpop.f32.mrb[0].mxu0
        %v2030 = vadd.f32 0.0, %v2029
        %v2031 = vpop.f32.mrb[0].mxu0
        %2032 = vmatprep.mubr.bf16.mxu0 0
        %2033 = vmatmul.mubr.bf16.gmra.mrb[0].mxu0 %v773
        %v2034 = vpop.f32.mrb[0].mxu0
        %v2035 = vadd.f32 0.0, %v2034
        %v2036 = vpop.f32.mrb[0].mxu0
        %v2037 = vpop.f32.mrb[0].mxu0
        %v2038 = vadd.f32 0.0, %v2037
        %v2039 = vpop.f32.mrb[0].mxu0
        %2040 = vmatprep.mubr.bf16.mxu0 0
        %2041 = vmatmul.mubr.bf16.gmra.mrb[0].mxu0 %v776
        %v2042 = vpop.f32.mrb[0].mxu0
        %v2043 = vadd.f32 0.0, %v2042
        %v2044 = vpop.f32.mrb[0].mxu0
        %v2045 = vpop.f32.mrb[0].mxu0
        %v2046 = vadd.f32 0.0, %v2045
        %v2047 = vpop.f32.mrb[0].mxu0
        %2048 = vmatprep.mubr.bf16.mxu0 0
        %2049 = vmatmul.mubr.bf16.gmra.mrb[0].mxu0 %v779
        %v2050 = vpop.f32.mrb[0].mxu0
        %v2051 = vadd.f32 0.0, %v2050
        %v2052 = vpop.f32.mrb[0].mxu0
        %v2053 = vpop.f32.mrb[0].mxu0
        %v2054 = vadd.f32 0.0, %v2053
        %v2055 = vpop.f32.mrb[0].mxu0
        %2056 = vmatprep.mubr.bf16.mxu0 0
        %2057 = vmatmul.mubr.bf16.gmra.mrb[0].mxu0 %v1899
        %v2058 = vpop.f32.mrb[0].mxu0
        %v2059 = vadd.f32 0.0, %v2058
        %v2060 = vpop.f32.mrb[0].mxu0
        %v2061 = vpop.f32.mrb[0].mxu0
        %v2062 = vadd.f32 0.0, %v2061
        %v2063 = vpop.f32.mrb[0].mxu0
        %2064 = vdwg.mxu0
        %v2065 = vadd.f32 %v1837, %v1939
        %v2066 = vadd.f32 %v1838, %v1942
        %v2067 = vadd.f32 %v1839, %v1947
        %v2068 = vadd.f32 %v1840, %v1950
        %v2069 = vadd.f32 %v1841, %v1955
        %v2070 = vadd.f32 %v1842, %v1958
        %v2071 = vadd.f32 %v1843, %v1963
        %v2072 = vadd.f32 %v1844, %v1966
        %v2073 = vadd.f32 %v1845, %v1971
        %v2074 = vadd.f32 %v1846, %v1974
        %v2075 = vadd.f32 %v1847, %v1979
        %v2076 = vadd.f32 %v1848, %v1982
        %v2077 = vadd.f32 %v1849, %v1987
        %v2078 = vadd.f32 %v1850, %v1990
        %v2079 = vadd.f32 %v1851, %v1995
        %v2080 = vadd.f32 %v1852, %v1998
        %v2081 = vadd.f32 %v1853, %v2003
        %v2082 = vadd.f32 %v1854, %v2006
        %v2083 = vadd.f32 %v1855, %v2011
        %v2084 = vadd.f32 %v1856, %v2014
        %v2085 = vadd.f32 %v1857, %v2019
        %v2086 = vadd.f32 %v1858, %v2022
        %v2087 = vadd.f32 %v1859, %v2027
        %v2088 = vadd.f32 %v1860, %v2030
        %v2089 = vadd.f32 %v1861, %v2035
        %v2090 = vadd.f32 %v1862, %v2038
        %v2091 = vadd.f32 %v1863, %v2043
        %v2092 = vadd.f32 %v1864, %v2046
        %v2093 = vadd.f32 %v1865, %v2051
        %v2094 = vadd.f32 %v1866, %v2054
        %v2095 = vadd.f32 %v1867, %v2059
        %v2096 = vadd.f32 %v1868, %v2062
        %v2098 = vrot.slane %v288, 5
        %v2099 = vrot.slane %v2098, 4
        %v2100 = vrot.slane %v289, 5
        %v2101 = vsel %vm1256, %v2099, %v2100
        %v2102 = vrot.slane %v2100, 4
        %v2103 = vrot.slane %v290, 5
        %v2104 = vsel %vm1256, %v2102, %v2103
        %s2105 = scalar_lea.vmem %s1, 10
        %v2106 = vld [vmem:[%s2105] sm:$0x3]
        %v2107 = vunpack.c.l.b16 %v2101
        %v2108 = vunpack.c.l.b16 %v2104
        %v2109 = vpack.c.b16 %v2108, %v2107
        %v2111 = vsel %vm732, %v2109, 0
        %v2114 = vsel %vm781, %v2106, 0
        %2116 = vmatprep.subr.bf16.mxu0 0
        %2117 = vmatpush1.bf16.msra.mxu0 %v2114
        %2118 = vmatprep.subr.bf16.mxu0 0
        %2119 = vmatpush1.bf16.msra.mxu0 0
        %2120 = vmatprep.subr.bf16.mxu0 0
        %2121 = vmatpush1.bf16.msra.mxu0 0
        %2122 = vmatprep.subr.bf16.mxu0 0
        %2123 = vmatpush1.bf16.msra.mxu0 0
        %2124 = vmatprep.subr.bf16.mxu0 0
        %2125 = vmatpush1.bf16.msra.mxu0 0
        %2126 = vmatprep.subr.bf16.mxu0 0
        %2127 = vmatpush1.bf16.msra.mxu0 0
        %2128 = vmatprep.subr.bf16.mxu0 0
        %2129 = vmatpush1.bf16.msra.mxu0 0
        %2130 = vmatprep.subr.bf16.mxu0 0
        %2131 = vmatpush1.bf16.msra.mxu0 0
        %2132 = vmatprep.subr.bf16.mxu0 0
        %2133 = vmatpush1.bf16.msra.mxu0 0
        %2134 = vmatprep.subr.bf16.mxu0 0
        %2135 = vmatpush1.bf16.msra.mxu0 0
        %2136 = vmatprep.subr.bf16.mxu0 0
        %2137 = vmatpush1.bf16.msra.mxu0 0
        %2138 = vmatprep.subr.bf16.mxu0 0
        %2139 = vmatpush1.bf16.msra.mxu0 0
        %2140 = vmatprep.subr.bf16.mxu0 0
        %2141 = vmatpush1.bf16.msra.mxu0 0
        %2142 = vmatprep.subr.bf16.mxu0 0
        %2143 = vmatpush1.bf16.msra.mxu0 0
        %2144 = vmatprep.subr.bf16.mxu0 0
        %2145 = vmatpush1.bf16.msra.mxu0 0
        %2146 = vmatprep.subr.bf16.mxu0 0
        %2147 = vmatpush1.bf16.msra.mxu0 0
        %2148 = vmatprep.mubr.bf16.mxu0 0
        %2149 = vmatmul.mubr.bf16.gmra.mrb[0].mxu0 %v1423
        %v2150 = vpop.f32.mrb[0].mxu0
        %v2151 = vadd.f32 0.0, %v2150
        %v2152 = vpop.f32.mrb[0].mxu0
        %v2153 = vpop.f32.mrb[0].mxu0
        %v2154 = vadd.f32 0.0, %v2153
        %v2155 = vpop.f32.mrb[0].mxu0
        %2156 = vmatprep.mubr.bf16.mxu0 0
        %2157 = vmatmul.mubr.bf16.gmra.mrb[0].mxu0 %v1426
        %v2158 = vpop.f32.mrb[0].mxu0
        %v2159 = vadd.f32 0.0, %v2158
        %v2160 = vpop.f32.mrb[0].mxu0
        %v2161 = vpop.f32.mrb[0].mxu0
        %v2162 = vadd.f32 0.0, %v2161
        %v2163 = vpop.f32.mrb[0].mxu0
        %2164 = vmatprep.mubr.bf16.mxu0 0
        %2165 = vmatmul.mubr.bf16.gmra.mrb[0].mxu0 %v1429
        %v2166 = vpop.f32.mrb[0].mxu0
        %v2167 = vadd.f32 0.0, %v2166
        %v2168 = vpop.f32.mrb[0].mxu0
        %v2169 = vpop.f32.mrb[0].mxu0
        %v2170 = vadd.f32 0.0, %v2169
        %v2171 = vpop.f32.mrb[0].mxu0
        %2172 = vmatprep.mubr.bf16.mxu0 0
        %2173 = vmatmul.mubr.bf16.gmra.mrb[0].mxu0 %v1432
        %v2174 = vpop.f32.mrb[0].mxu0
        %v2175 = vadd.f32 0.0, %v2174
        %v2176 = vpop.f32.mrb[0].mxu0
        %v2177 = vpop.f32.mrb[0].mxu0
        %v2178 = vadd.f32 0.0, %v2177
        %v2179 = vpop.f32.mrb[0].mxu0
        %2180 = vmatprep.mubr.bf16.mxu0 0
        %2181 = vmatmul.mubr.bf16.gmra.mrb[0].mxu0 %v1435
        %v2182 = vpop.f32.mrb[0].mxu0
        %v2183 = vadd.f32 0.0, %v2182
        %v2184 = vpop.f32.mrb[0].mxu0
        %v2185 = vpop.f32.mrb[0].mxu0
        %v2186 = vadd.f32 0.0, %v2185
        %v2187 = vpop.f32.mrb[0].mxu0
        %2188 = vmatprep.mubr.bf16.mxu0 0
        %2189 = vmatmul.mubr.bf16.gmra.mrb[0].mxu0 %v1438
        %v2190 = vpop.f32.mrb[0].mxu0
        %v2191 = vadd.f32 0.0, %v2190
        %v2192 = vpop.f32.mrb[0].mxu0
        %v2193 = vpop.f32.mrb[0].mxu0
        %v2194 = vadd.f32 0.0, %v2193
        %v2195 = vpop.f32.mrb[0].mxu0
        %2196 = vmatprep.mubr.bf16.mxu0 0
        %2197 = vmatmul.mubr.bf16.gmra.mrb[0].mxu0 %v1441
        %v2198 = vpop.f32.mrb[0].mxu0
        %v2199 = vadd.f32 0.0, %v2198
        %v2200 = vpop.f32.mrb[0].mxu0
        %v2201 = vpop.f32.mrb[0].mxu0
        %v2202 = vadd.f32 0.0, %v2201
        %v2203 = vpop.f32.mrb[0].mxu0
        %2204 = vmatprep.mubr.bf16.mxu0 0
        %2205 = vmatmul.mubr.bf16.gmra.mrb[0].mxu0 %v1444
        %v2206 = vpop.f32.mrb[0].mxu0
        %v2207 = vadd.f32 0.0, %v2206
        %v2208 = vpop.f32.mrb[0].mxu0
        %v2209 = vpop.f32.mrb[0].mxu0
        %v2210 = vadd.f32 0.0, %v2209
        %v2211 = vpop.f32.mrb[0].mxu0
        %2212 = vmatprep.mubr.bf16.mxu0 0
        %2213 = vmatmul.mubr.bf16.gmra.mrb[0].mxu0 %v1447
        %v2214 = vpop.f32.mrb[0].mxu0
        %v2215 = vadd.f32 0.0, %v2214
        %v2216 = vpop.f32.mrb[0].mxu0
        %v2217 = vpop.f32.mrb[0].mxu0
        %v2218 = vadd.f32 0.0, %v2217
        %v2219 = vpop.f32.mrb[0].mxu0
        %2220 = vmatprep.mubr.bf16.mxu0 0
        %2221 = vmatmul.mubr.bf16.gmra.mrb[0].mxu0 %v1450
        %v2222 = vpop.f32.mrb[0].mxu0
        %v2223 = vadd.f32 0.0, %v2222
        %v2224 = vpop.f32.mrb[0].mxu0
        %v2225 = vpop.f32.mrb[0].mxu0
        %v2226 = vadd.f32 0.0, %v2225
        %v2227 = vpop.f32.mrb[0].mxu0
        %2228 = vmatprep.mubr.bf16.mxu0 0
        %2229 = vmatmul.mubr.bf16.gmra.mrb[0].mxu0 %v1453
        %v2230 = vpop.f32.mrb[0].mxu0
        %v2231 = vadd.f32 0.0, %v2230
        %v2232 = vpop.f32.mrb[0].mxu0
        %v2233 = vpop.f32.mrb[0].mxu0
        %v2234 = vadd.f32 0.0, %v2233
        %v2235 = vpop.f32.mrb[0].mxu0
        %2236 = vmatprep.mubr.bf16.mxu0 0
        %2237 = vmatmul.mubr.bf16.gmra.mrb[0].mxu0 %v1456
        %v2238 = vpop.f32.mrb[0].mxu0
        %v2239 = vadd.f32 0.0, %v2238
        %v2240 = vpop.f32.mrb[0].mxu0
        %v2241 = vpop.f32.mrb[0].mxu0
        %v2242 = vadd.f32 0.0, %v2241
        %v2243 = vpop.f32.mrb[0].mxu0
        %2244 = vmatprep.mubr.bf16.mxu0 0
        %2245 = vmatmul.mubr.bf16.gmra.mrb[0].mxu0 %v1459
        %v2246 = vpop.f32.mrb[0].mxu0
        %v2247 = vadd.f32 0.0, %v2246
        %v2248 = vpop.f32.mrb[0].mxu0
        %v2249 = vpop.f32.mrb[0].mxu0
        %v2250 = vadd.f32 0.0, %v2249
        %v2251 = vpop.f32.mrb[0].mxu0
        %2252 = vmatprep.mubr.bf16.mxu0 0
        %2253 = vmatmul.mubr.bf16.gmra.mrb[0].mxu0 %v1462
        %v2254 = vpop.f32.mrb[0].mxu0
        %v2255 = vadd.f32 0.0, %v2254
        %v2256 = vpop.f32.mrb[0].mxu0
        %v2257 = vpop.f32.mrb[0].mxu0
        %v2258 = vadd.f32 0.0, %v2257
        %v2259 = vpop.f32.mrb[0].mxu0
        %2260 = vmatprep.mubr.bf16.mxu0 0
        %2261 = vmatmul.mubr.bf16.gmra.mrb[0].mxu0 %v1465
        %v2262 = vpop.f32.mrb[0].mxu0
        %v2263 = vadd.f32 0.0, %v2262
        %v2264 = vpop.f32.mrb[0].mxu0
        %v2265 = vpop.f32.mrb[0].mxu0
        %v2266 = vadd.f32 0.0, %v2265
        %v2267 = vpop.f32.mrb[0].mxu0
        %2268 = vmatprep.mubr.bf16.mxu0 0
        %2269 = vmatmul.mubr.bf16.gmra.mrb[0].mxu0 %v2111
        %v2270 = vpop.f32.mrb[0].mxu0
        %v2271 = vadd.f32 0.0, %v2270
        %v2272 = vpop.f32.mrb[0].mxu0
        %v2273 = vpop.f32.mrb[0].mxu0
        %v2274 = vadd.f32 0.0, %v2273
        %v2275 = vpop.f32.mrb[0].mxu0
        %2276 = vdwg.mxu0
        %v2277 = vadd.f32 %v2065, %v2151
        %v2278 = vadd.f32 %v2066, %v2154
        %v2279 = vadd.f32 %v2067, %v2159
        %v2280 = vadd.f32 %v2068, %v2162
        %v2281 = vadd.f32 %v2069, %v2167
        %v2282 = vadd.f32 %v2070, %v2170
        %v2283 = vadd.f32 %v2071, %v2175
        %v2284 = vadd.f32 %v2072, %v2178
        %v2285 = vadd.f32 %v2073, %v2183
        %v2286 = vadd.f32 %v2074, %v2186
        %v2287 = vadd.f32 %v2075, %v2191
        %v2288 = vadd.f32 %v2076, %v2194
        %v2289 = vadd.f32 %v2077, %v2199
        %v2290 = vadd.f32 %v2078, %v2202
        %v2291 = vadd.f32 %v2079, %v2207
        %v2292 = vadd.f32 %v2080, %v2210
        %v2293 = vadd.f32 %v2081, %v2215
        %v2294 = vadd.f32 %v2082, %v2218
        %v2295 = vadd.f32 %v2083, %v2223
        %v2296 = vadd.f32 %v2084, %v2226
        %v2297 = vadd.f32 %v2085, %v2231
        %v2298 = vadd.f32 %v2086, %v2234
        %v2299 = vadd.f32 %v2087, %v2239
        %v2300 = vadd.f32 %v2088, %v2242
        %v2301 = vadd.f32 %v2089, %v2247
        %v2302 = vadd.f32 %v2090, %v2250
        %v2303 = vadd.f32 %v2091, %v2255
        %v2304 = vadd.f32 %v2092, %v2258
        %v2305 = vadd.f32 %v2093, %v2263
        %v2306 = vadd.f32 %v2094, %v2266
        %v2307 = vadd.f32 %v2095, %v2271
        %v2308 = vadd.f32 %v2096, %v2274
        %s2309 = scalar_lea.vmem %s1, 12
        %v2310 = vld [vmem:[%s2309] sm:$0x3]
        %v2313 = vunpack.c.l.b16 %v291
        %v2314 = vunpack.c.l.b16 %v292
        %v2315 = vpack.c.b16 %v2314, %v2313
        %v2317 = vsel %vm732, %v2315, 0
        %v2320 = vsel %vm781, %v2310, 0
        %2322 = vmatprep.subr.bf16.mxu0 0
        %2323 = vmatpush1.bf16.msra.mxu0 %v2320
        %2324 = vmatprep.subr.bf16.mxu0 0
        %2325 = vmatpush1.bf16.msra.mxu0 0
        %2326 = vmatprep.subr.bf16.mxu0 0
        %2327 = vmatpush1.bf16.msra.mxu0 0
        %2328 = vmatprep.subr.bf16.mxu0 0
        %2329 = vmatpush1.bf16.msra.mxu0 0
        %2330 = vmatprep.subr.bf16.mxu0 0
        %2331 = vmatpush1.bf16.msra.mxu0 0
        %2332 = vmatprep.subr.bf16.mxu0 0
        %2333 = vmatpush1.bf16.msra.mxu0 0
        %2334 = vmatprep.subr.bf16.mxu0 0
        %2335 = vmatpush1.bf16.msra.mxu0 0
        %2336 = vmatprep.subr.bf16.mxu0 0
        %2337 = vmatpush1.bf16.msra.mxu0 0
        %2338 = vmatprep.subr.bf16.mxu0 0
        %2339 = vmatpush1.bf16.msra.mxu0 0
        %2340 = vmatprep.subr.bf16.mxu0 0
        %2341 = vmatpush1.bf16.msra.mxu0 0
        %2342 = vmatprep.subr.bf16.mxu0 0
        %2343 = vmatpush1.bf16.msra.mxu0 0
        %2344 = vmatprep.subr.bf16.mxu0 0
        %2345 = vmatpush1.bf16.msra.mxu0 0
        %2346 = vmatprep.subr.bf16.mxu0 0
        %2347 = vmatpush1.bf16.msra.mxu0 0
        %2348 = vmatprep.subr.bf16.mxu0 0
        %2349 = vmatpush1.bf16.msra.mxu0 0
        %2350 = vmatprep.subr.bf16.mxu0 0
        %2351 = vmatpush1.bf16.msra.mxu0 0
        %2352 = vmatprep.subr.bf16.mxu0 0
        %2353 = vmatpush1.bf16.msra.mxu0 0
        %2354 = vmatprep.mubr.bf16.mxu0 0
        %2355 = vmatmul.mubr.bf16.gmra.mrb[0].mxu0 %v1033
        %v2356 = vpop.f32.mrb[0].mxu0
        %v2357 = vadd.f32 0.0, %v2356
        %v2358 = vpop.f32.mrb[0].mxu0
        %v2359 = vpop.f32.mrb[0].mxu0
        %v2360 = vadd.f32 0.0, %v2359
        %v2361 = vpop.f32.mrb[0].mxu0
        %2362 = vmatprep.mubr.bf16.mxu0 0
        %2363 = vmatmul.mubr.bf16.gmra.mrb[0].mxu0 %v1036
        %v2364 = vpop.f32.mrb[0].mxu0
        %v2365 = vadd.f32 0.0, %v2364
        %v2366 = vpop.f32.mrb[0].mxu0
        %v2367 = vpop.f32.mrb[0].mxu0
        %v2368 = vadd.f32 0.0, %v2367
        %v2369 = vpop.f32.mrb[0].mxu0
        %2370 = vmatprep.mubr.bf16.mxu0 0
        %2371 = vmatmul.mubr.bf16.gmra.mrb[0].mxu0 %v1039
        %v2372 = vpop.f32.mrb[0].mxu0
        %v2373 = vadd.f32 0.0, %v2372
        %v2374 = vpop.f32.mrb[0].mxu0
        %v2375 = vpop.f32.mrb[0].mxu0
        %v2376 = vadd.f32 0.0, %v2375
        %v2377 = vpop.f32.mrb[0].mxu0
        %2378 = vmatprep.mubr.bf16.mxu0 0
        %2379 = vmatmul.mubr.bf16.gmra.mrb[0].mxu0 %v1042
        %v2380 = vpop.f32.mrb[0].mxu0
        %v2381 = vadd.f32 0.0, %v2380
        %v2382 = vpop.f32.mrb[0].mxu0
        %v2383 = vpop.f32.mrb[0].mxu0
        %v2384 = vadd.f32 0.0, %v2383
        %v2385 = vpop.f32.mrb[0].mxu0
        %2386 = vmatprep.mubr.bf16.mxu0 0
        %2387 = vmatmul.mubr.bf16.gmra.mrb[0].mxu0 %v1045
        %v2388 = vpop.f32.mrb[0].mxu0
        %v2389 = vadd.f32 0.0, %v2388
        %v2390 = vpop.f32.mrb[0].mxu0
        %v2391 = vpop.f32.mrb[0].mxu0
        %v2392 = vadd.f32 0.0, %v2391
        %v2393 = vpop.f32.mrb[0].mxu0
        %2394 = vmatprep.mubr.bf16.mxu0 0
        %2395 = vmatmul.mubr.bf16.gmra.mrb[0].mxu0 %v1048
        %v2396 = vpop.f32.mrb[0].mxu0
        %v2397 = vadd.f32 0.0, %v2396
        %v2398 = vpop.f32.mrb[0].mxu0
        %v2399 = vpop.f32.mrb[0].mxu0
        %v2400 = vadd.f32 0.0, %v2399
        %v2401 = vpop.f32.mrb[0].mxu0
        %2402 = vmatprep.mubr.bf16.mxu0 0
        %2403 = vmatmul.mubr.bf16.gmra.mrb[0].mxu0 %v1051
        %v2404 = vpop.f32.mrb[0].mxu0
        %v2405 = vadd.f32 0.0, %v2404
        %v2406 = vpop.f32.mrb[0].mxu0
        %v2407 = vpop.f32.mrb[0].mxu0
        %v2408 = vadd.f32 0.0, %v2407
        %v2409 = vpop.f32.mrb[0].mxu0
        %2410 = vmatprep.mubr.bf16.mxu0 0
        %2411 = vmatmul.mubr.bf16.gmra.mrb[0].mxu0 %v1054
        %v2412 = vpop.f32.mrb[0].mxu0
        %v2413 = vadd.f32 0.0, %v2412
        %v2414 = vpop.f32.mrb[0].mxu0
        %v2415 = vpop.f32.mrb[0].mxu0
        %v2416 = vadd.f32 0.0, %v2415
        %v2417 = vpop.f32.mrb[0].mxu0
        %2418 = vmatprep.mubr.bf16.mxu0 0
        %2419 = vmatmul.mubr.bf16.gmra.mrb[0].mxu0 %v1057
        %v2420 = vpop.f32.mrb[0].mxu0
        %v2421 = vadd.f32 0.0, %v2420
        %v2422 = vpop.f32.mrb[0].mxu0
        %v2423 = vpop.f32.mrb[0].mxu0
        %v2424 = vadd.f32 0.0, %v2423
        %v2425 = vpop.f32.mrb[0].mxu0
        %2426 = vmatprep.mubr.bf16.mxu0 0
        %2427 = vmatmul.mubr.bf16.gmra.mrb[0].mxu0 %v1060
        %v2428 = vpop.f32.mrb[0].mxu0
        %v2429 = vadd.f32 0.0, %v2428
        %v2430 = vpop.f32.mrb[0].mxu0
        %v2431 = vpop.f32.mrb[0].mxu0
        %v2432 = vadd.f32 0.0, %v2431
        %v2433 = vpop.f32.mrb[0].mxu0
        %2434 = vmatprep.mubr.bf16.mxu0 0
        %2435 = vmatmul.mubr.bf16.gmra.mrb[0].mxu0 %v1063
        %v2436 = vpop.f32.mrb[0].mxu0
        %v2437 = vadd.f32 0.0, %v2436
        %v2438 = vpop.f32.mrb[0].mxu0
        %v2439 = vpop.f32.mrb[0].mxu0
        %v2440 = vadd.f32 0.0, %v2439
        %v2441 = vpop.f32.mrb[0].mxu0
        %2442 = vmatprep.mubr.bf16.mxu0 0
        %2443 = vmatmul.mubr.bf16.gmra.mrb[0].mxu0 %v1066
        %v2444 = vpop.f32.mrb[0].mxu0
        %v2445 = vadd.f32 0.0, %v2444
        %v2446 = vpop.f32.mrb[0].mxu0
        %v2447 = vpop.f32.mrb[0].mxu0
        %v2448 = vadd.f32 0.0, %v2447
        %v2449 = vpop.f32.mrb[0].mxu0
        %2450 = vmatprep.mubr.bf16.mxu0 0
        %2451 = vmatmul.mubr.bf16.gmra.mrb[0].mxu0 %v1069
        %v2452 = vpop.f32.mrb[0].mxu0
        %v2453 = vadd.f32 0.0, %v2452
        %v2454 = vpop.f32.mrb[0].mxu0
        %v2455 = vpop.f32.mrb[0].mxu0
        %v2456 = vadd.f32 0.0, %v2455
        %v2457 = vpop.f32.mrb[0].mxu0
        %2458 = vmatprep.mubr.bf16.mxu0 0
        %2459 = vmatmul.mubr.bf16.gmra.mrb[0].mxu0 %v1072
        %v2460 = vpop.f32.mrb[0].mxu0
        %v2461 = vadd.f32 0.0, %v2460
        %v2462 = vpop.f32.mrb[0].mxu0
        %v2463 = vpop.f32.mrb[0].mxu0
        %v2464 = vadd.f32 0.0, %v2463
        %v2465 = vpop.f32.mrb[0].mxu0
        %2466 = vmatprep.mubr.bf16.mxu0 0
        %2467 = vmatmul.mubr.bf16.gmra.mrb[0].mxu0 %v1671
        %v2468 = vpop.f32.mrb[0].mxu0
        %v2469 = vadd.f32 0.0, %v2468
        %v2470 = vpop.f32.mrb[0].mxu0
        %v2471 = vpop.f32.mrb[0].mxu0
        %v2472 = vadd.f32 0.0, %v2471
        %v2473 = vpop.f32.mrb[0].mxu0
        %2474 = vmatprep.mubr.bf16.mxu0 0
        %2475 = vmatmul.mubr.bf16.gmra.mrb[0].mxu0 %v2317
        %v2476 = vpop.f32.mrb[0].mxu0
        %v2477 = vadd.f32 0.0, %v2476
        %v2478 = vpop.f32.mrb[0].mxu0
        %v2479 = vpop.f32.mrb[0].mxu0
        %v2480 = vadd.f32 0.0, %v2479
        %v2481 = vpop.f32.mrb[0].mxu0
        %2482 = vdwg.mxu0
        %v2483 = vadd.f32 %v2277, %v2357
        %v2484 = vadd.f32 %v2278, %v2360
        %v2485 = vadd.f32 %v2279, %v2365
        %v2486 = vadd.f32 %v2280, %v2368
        %v2487 = vadd.f32 %v2281, %v2373
        %v2488 = vadd.f32 %v2282, %v2376
        %v2489 = vadd.f32 %v2283, %v2381
        %v2490 = vadd.f32 %v2284, %v2384
        %v2491 = vadd.f32 %v2285, %v2389
        %v2492 = vadd.f32 %v2286, %v2392
        %v2493 = vadd.f32 %v2287, %v2397
        %v2494 = vadd.f32 %v2288, %v2400
        %v2495 = vadd.f32 %v2289, %v2405
        %v2496 = vadd.f32 %v2290, %v2408
        %v2497 = vadd.f32 %v2291, %v2413
        %v2498 = vadd.f32 %v2292, %v2416
        %v2499 = vadd.f32 %v2293, %v2421
        %v2500 = vadd.f32 %v2294, %v2424
        %v2501 = vadd.f32 %v2295, %v2429
        %v2502 = vadd.f32 %v2296, %v2432
        %v2503 = vadd.f32 %v2297, %v2437
        %v2504 = vadd.f32 %v2298, %v2440
        %v2505 = vadd.f32 %v2299, %v2445
        %v2506 = vadd.f32 %v2300, %v2448
        %v2507 = vadd.f32 %v2301, %v2453
        %v2508 = vadd.f32 %v2302, %v2456
        %v2509 = vadd.f32 %v2303, %v2461
        %v2510 = vadd.f32 %v2304, %v2464
        %v2511 = vadd.f32 %v2305, %v2469
        %v2512 = vadd.f32 %v2306, %v2472
        %v2513 = vadd.f32 %v2307, %v2477
        %v2514 = vadd.f32 %v2308, %v2480
        %v2516 = vshrl.u32 %v291, 16
        %v2518 = vrot.slane %v2516, 4
        %v2519 = vshll.u32 %v291, 16
        %v2521 = vrot.slane %v2519, 5
        %v2522 = vor.u32 %v2518, %v2521
        %v2523 = vrot.slane %v2522, 4
        %v2525 = vshll.u32 %v292, 16
        %v2527 = vrot.slane %v2525, 5
        %v2528 = vsel %vm297, %v2523, %v2527
        %v2529 = vshrl.u32 %v292, 16
        %v2531 = vrot.slane %v2529, 4
        %v2532 = vor.u32 %v2531, %v2527
        %v2533 = vrot.slane %v2532, 4
        %v2535 = vshll.u32 %v293, 16
        %v2537 = vrot.slane %v2535, 5
        %v2538 = vsel %vm297, %v2533, %v2537
        %s2539 = scalar_lea.vmem %s1, 14
        %v2540 = vld [vmem:[%s2539] sm:$0x3]
        %v2541 = vunpack.c.l.b16 %v2528
        %v2542 = vunpack.c.l.b16 %v2538
        %v2543 = vpack.c.b16 %v2542, %v2541
        %v2545 = vsel %vm732, %v2543, 0
        %v2548 = vsel %vm781, %v2540, 0
        %2550 = vmatprep.subr.bf16.mxu0 0
        %2551 = vmatpush1.bf16.msra.mxu0 %v2548
        %2552 = vmatprep.subr.bf16.mxu0 0
        %2553 = vmatpush1.bf16.msra.mxu0 0
        %2554 = vmatprep.subr.bf16.mxu0 0
        %2555 = vmatpush1.bf16.msra.mxu0 0
        %2556 = vmatprep.subr.bf16.mxu0 0
        %2557 = vmatpush1.bf16.msra.mxu0 0
        %2558 = vmatprep.subr.bf16.mxu0 0
        %2559 = vmatpush1.bf16.msra.mxu0 0
        %2560 = vmatprep.subr.bf16.mxu0 0
        %2561 = vmatpush1.bf16.msra.mxu0 0
        %2562 = vmatprep.subr.bf16.mxu0 0
        %2563 = vmatpush1.bf16.msra.mxu0 0
        %2564 = vmatprep.subr.bf16.mxu0 0
        %2565 = vmatpush1.bf16.msra.mxu0 0
        %2566 = vmatprep.subr.bf16.mxu0 0
        %2567 = vmatpush1.bf16.msra.mxu0 0
        %2568 = vmatprep.subr.bf16.mxu0 0
        %2569 = vmatpush1.bf16.msra.mxu0 0
        %2570 = vmatprep.subr.bf16.mxu0 0
        %2571 = vmatpush1.bf16.msra.mxu0 0
        %2572 = vmatprep.subr.bf16.mxu0 0
        %2573 = vmatpush1.bf16.msra.mxu0 0
        %2574 = vmatprep.subr.bf16.mxu0 0
        %2575 = vmatpush1.bf16.msra.mxu0 0
        %2576 = vmatprep.subr.bf16.mxu0 0
        %2577 = vmatpush1.bf16.msra.mxu0 0
        %2578 = vmatprep.subr.bf16.mxu0 0
        %2579 = vmatpush1.bf16.msra.mxu0 0
        %2580 = vmatprep.subr.bf16.mxu0 0
        %2581 = vmatpush1.bf16.msra.mxu0 0
        %2582 = vmatprep.mubr.bf16.mxu0 0
        %2583 = vmatmul.mubr.bf16.gmra.mrb[0].mxu0 %v740
        %v2584 = vpop.f32.mrb[0].mxu0
        %v2585 = vadd.f32 0.0, %v2584
        %v2586 = vpop.f32.mrb[0].mxu0
        %v2587 = vpop.f32.mrb[0].mxu0
        %v2588 = vadd.f32 0.0, %v2587
        %v2589 = vpop.f32.mrb[0].mxu0
        %2590 = vmatprep.mubr.bf16.mxu0 0
        %2591 = vmatmul.mubr.bf16.gmra.mrb[0].mxu0 %v743
        %v2592 = vpop.f32.mrb[0].mxu0
        %v2593 = vadd.f32 0.0, %v2592
        %v2594 = vpop.f32.mrb[0].mxu0
        %v2595 = vpop.f32.mrb[0].mxu0
        %v2596 = vadd.f32 0.0, %v2595
        %v2597 = vpop.f32.mrb[0].mxu0
        %2598 = vmatprep.mubr.bf16.mxu0 0
        %2599 = vmatmul.mubr.bf16.gmra.mrb[0].mxu0 %v746
        %v2600 = vpop.f32.mrb[0].mxu0
        %v2601 = vadd.f32 0.0, %v2600
        %v2602 = vpop.f32.mrb[0].mxu0
        %v2603 = vpop.f32.mrb[0].mxu0
        %v2604 = vadd.f32 0.0, %v2603
        %v2605 = vpop.f32.mrb[0].mxu0
        %2606 = vmatprep.mubr.bf16.mxu0 0
        %2607 = vmatmul.mubr.bf16.gmra.mrb[0].mxu0 %v749
        %v2608 = vpop.f32.mrb[0].mxu0
        %v2609 = vadd.f32 0.0, %v2608
        %v2610 = vpop.f32.mrb[0].mxu0
        %v2611 = vpop.f32.mrb[0].mxu0
        %v2612 = vadd.f32 0.0, %v2611
        %v2613 = vpop.f32.mrb[0].mxu0
        %2614 = vmatprep.mubr.bf16.mxu0 0
        %2615 = vmatmul.mubr.bf16.gmra.mrb[0].mxu0 %v752
        %v2616 = vpop.f32.mrb[0].mxu0
        %v2617 = vadd.f32 0.0, %v2616
        %v2618 = vpop.f32.mrb[0].mxu0
        %v2619 = vpop.f32.mrb[0].mxu0
        %v2620 = vadd.f32 0.0, %v2619
        %v2621 = vpop.f32.mrb[0].mxu0
        %2622 = vmatprep.mubr.bf16.mxu0 0
        %2623 = vmatmul.mubr.bf16.gmra.mrb[0].mxu0 %v755
        %v2624 = vpop.f32.mrb[0].mxu0
        %v2625 = vadd.f32 0.0, %v2624
        %v2626 = vpop.f32.mrb[0].mxu0
        %v2627 = vpop.f32.mrb[0].mxu0
        %v2628 = vadd.f32 0.0, %v2627
        %v2629 = vpop.f32.mrb[0].mxu0
        %2630 = vmatprep.mubr.bf16.mxu0 0
        %2631 = vmatmul.mubr.bf16.gmra.mrb[0].mxu0 %v758
        %v2632 = vpop.f32.mrb[0].mxu0
        %v2633 = vadd.f32 0.0, %v2632
        %v2634 = vpop.f32.mrb[0].mxu0
        %v2635 = vpop.f32.mrb[0].mxu0
        %v2636 = vadd.f32 0.0, %v2635
        %v2637 = vpop.f32.mrb[0].mxu0
        %2638 = vmatprep.mubr.bf16.mxu0 0
        %2639 = vmatmul.mubr.bf16.gmra.mrb[0].mxu0 %v761
        %v2640 = vpop.f32.mrb[0].mxu0
        %v2641 = vadd.f32 0.0, %v2640
        %v2642 = vpop.f32.mrb[0].mxu0
        %v2643 = vpop.f32.mrb[0].mxu0
        %v2644 = vadd.f32 0.0, %v2643
        %v2645 = vpop.f32.mrb[0].mxu0
        %2646 = vmatprep.mubr.bf16.mxu0 0
        %2647 = vmatmul.mubr.bf16.gmra.mrb[0].mxu0 %v764
        %v2648 = vpop.f32.mrb[0].mxu0
        %v2649 = vadd.f32 0.0, %v2648
        %v2650 = vpop.f32.mrb[0].mxu0
        %v2651 = vpop.f32.mrb[0].mxu0
        %v2652 = vadd.f32 0.0, %v2651
        %v2653 = vpop.f32.mrb[0].mxu0
        %2654 = vmatprep.mubr.bf16.mxu0 0
        %2655 = vmatmul.mubr.bf16.gmra.mrb[0].mxu0 %v767
        %v2656 = vpop.f32.mrb[0].mxu0
        %v2657 = vadd.f32 0.0, %v2656
        %v2658 = vpop.f32.mrb[0].mxu0
        %v2659 = vpop.f32.mrb[0].mxu0
        %v2660 = vadd.f32 0.0, %v2659
        %v2661 = vpop.f32.mrb[0].mxu0
        %2662 = vmatprep.mubr.bf16.mxu0 0
        %2663 = vmatmul.mubr.bf16.gmra.mrb[0].mxu0 %v770
        %v2664 = vpop.f32.mrb[0].mxu0
        %v2665 = vadd.f32 0.0, %v2664
        %v2666 = vpop.f32.mrb[0].mxu0
        %v2667 = vpop.f32.mrb[0].mxu0
        %v2668 = vadd.f32 0.0, %v2667
        %v2669 = vpop.f32.mrb[0].mxu0
        %2670 = vmatprep.mubr.bf16.mxu0 0
        %2671 = vmatmul.mubr.bf16.gmra.mrb[0].mxu0 %v773
        %v2672 = vpop.f32.mrb[0].mxu0
        %v2673 = vadd.f32 0.0, %v2672
        %v2674 = vpop.f32.mrb[0].mxu0
        %v2675 = vpop.f32.mrb[0].mxu0
        %v2676 = vadd.f32 0.0, %v2675
        %v2677 = vpop.f32.mrb[0].mxu0
        %2678 = vmatprep.mubr.bf16.mxu0 0
        %2679 = vmatmul.mubr.bf16.gmra.mrb[0].mxu0 %v776
        %v2680 = vpop.f32.mrb[0].mxu0
        %v2681 = vadd.f32 0.0, %v2680
        %v2682 = vpop.f32.mrb[0].mxu0
        %v2683 = vpop.f32.mrb[0].mxu0
        %v2684 = vadd.f32 0.0, %v2683
        %v2685 = vpop.f32.mrb[0].mxu0
        %2686 = vmatprep.mubr.bf16.mxu0 0
        %2687 = vmatmul.mubr.bf16.gmra.mrb[0].mxu0 %v779
        %v2688 = vpop.f32.mrb[0].mxu0
        %v2689 = vadd.f32 0.0, %v2688
        %v2690 = vpop.f32.mrb[0].mxu0
        %v2691 = vpop.f32.mrb[0].mxu0
        %v2692 = vadd.f32 0.0, %v2691
        %v2693 = vpop.f32.mrb[0].mxu0
        %2694 = vmatprep.mubr.bf16.mxu0 0
        %2695 = vmatmul.mubr.bf16.gmra.mrb[0].mxu0 %v1899
        %v2696 = vpop.f32.mrb[0].mxu0
        %v2697 = vadd.f32 0.0, %v2696
        %v2698 = vpop.f32.mrb[0].mxu0
        %v2699 = vpop.f32.mrb[0].mxu0
        %v2700 = vadd.f32 0.0, %v2699
        %v2701 = vpop.f32.mrb[0].mxu0
        %2702 = vmatprep.mubr.bf16.mxu0 0
        %2703 = vmatmul.mubr.bf16.gmra.mrb[0].mxu0 %v2545
        %v2704 = vpop.f32.mrb[0].mxu0
        %v2705 = vadd.f32 0.0, %v2704
        %v2706 = vpop.f32.mrb[0].mxu0
        %v2707 = vpop.f32.mrb[0].mxu0
        %v2708 = vadd.f32 0.0, %v2707
        %v2709 = vpop.f32.mrb[0].mxu0
        %2710 = vdwg.mxu0
        %v2711 = vadd.f32 %v2483, %v2585
        %v2712 = vadd.f32 %v2484, %v2588
        %v2713 = vadd.f32 %v2485, %v2593
        %v2714 = vadd.f32 %v2486, %v2596
        %v2715 = vadd.f32 %v2487, %v2601
        %v2716 = vadd.f32 %v2488, %v2604
        %v2717 = vadd.f32 %v2489, %v2609
        %v2718 = vadd.f32 %v2490, %v2612
        %v2719 = vadd.f32 %v2491, %v2617
        %v2720 = vadd.f32 %v2492, %v2620
        %v2721 = vadd.f32 %v2493, %v2625
        %v2722 = vadd.f32 %v2494, %v2628
        %v2723 = vadd.f32 %v2495, %v2633
        %v2724 = vadd.f32 %v2496, %v2636
        %v2725 = vadd.f32 %v2497, %v2641
        %v2726 = vadd.f32 %v2498, %v2644
        %v2727 = vadd.f32 %v2499, %v2649
        %v2728 = vadd.f32 %v2500, %v2652
        %v2729 = vadd.f32 %v2501, %v2657
        %v2730 = vadd.f32 %v2502, %v2660
        %v2731 = vadd.f32 %v2503, %v2665
        %v2732 = vadd.f32 %v2504, %v2668
        %v2733 = vadd.f32 %v2505, %v2673
        %v2734 = vadd.f32 %v2506, %v2676
        %v2735 = vadd.f32 %v2507, %v2681
        %v2736 = vadd.f32 %v2508, %v2684
        %v2737 = vadd.f32 %v2509, %v2689
        %v2738 = vadd.f32 %v2510, %v2692
        %v2739 = vadd.f32 %v2511, %v2697
        %v2740 = vadd.f32 %v2512, %v2700
        %v2741 = vadd.f32 %v2513, %v2705
        %v2742 = vadd.f32 %v2514, %v2708
        %v2744 = vrot.slane %v291, 5
        %v2745 = vrot.slane %v2744, 4
        %v2746 = vrot.slane %v292, 5
        %v2747 = vsel %vm1256, %v2745, %v2746
        %v2748 = vrot.slane %v2746, 4
        %v2749 = vrot.slane %v293, 5
        %v2750 = vsel %vm1256, %v2748, %v2749
        %s2751 = scalar_lea.vmem %s1, 16
        %v2752 = vld [vmem:[%s2751] sm:$0x3]
        %v2753 = vunpack.c.l.b16 %v2747
        %v2754 = vunpack.c.l.b16 %v2750
        %v2755 = vpack.c.b16 %v2754, %v2753
        %v2757 = vsel %vm732, %v2755, 0
        %v2760 = vsel %vm781, %v2752, 0
        %2762 = vmatprep.subr.bf16.mxu0 0
        %2763 = vmatpush1.bf16.msra.mxu0 %v2760
        %2764 = vmatprep.subr.bf16.mxu0 0
        %2765 = vmatpush1.bf16.msra.mxu0 0
        %2766 = vmatprep.subr.bf16.mxu0 0
        %2767 = vmatpush1.bf16.msra.mxu0 0
        %2768 = vmatprep.subr.bf16.mxu0 0
        %2769 = vmatpush1.bf16.msra.mxu0 0
        %2770 = vmatprep.subr.bf16.mxu0 0
        %2771 = vmatpush1.bf16.msra.mxu0 0
        %2772 = vmatprep.subr.bf16.mxu0 0
        %2773 = vmatpush1.bf16.msra.mxu0 0
        %2774 = vmatprep.subr.bf16.mxu0 0
        %2775 = vmatpush1.bf16.msra.mxu0 0
        %2776 = vmatprep.subr.bf16.mxu0 0
        %2777 = vmatpush1.bf16.msra.mxu0 0
        %2778 = vmatprep.subr.bf16.mxu0 0
        %2779 = vmatpush1.bf16.msra.mxu0 0
        %2780 = vmatprep.subr.bf16.mxu0 0
        %2781 = vmatpush1.bf16.msra.mxu0 0
        %2782 = vmatprep.subr.bf16.mxu0 0
        %2783 = vmatpush1.bf16.msra.mxu0 0
        %2784 = vmatprep.subr.bf16.mxu0 0
        %2785 = vmatpush1.bf16.msra.mxu0 0
        %2786 = vmatprep.subr.bf16.mxu0 0
        %2787 = vmatpush1.bf16.msra.mxu0 0
        %2788 = vmatprep.subr.bf16.mxu0 0
        %2789 = vmatpush1.bf16.msra.mxu0 0
        %2790 = vmatprep.subr.bf16.mxu0 0
        %2791 = vmatpush1.bf16.msra.mxu0 0
        %2792 = vmatprep.subr.bf16.mxu0 0
        %2793 = vmatpush1.bf16.msra.mxu0 0
        %2794 = vmatprep.mubr.bf16.mxu0 0
        %2795 = vmatmul.mubr.bf16.gmra.mrb[0].mxu0 %v1426
        %v2796 = vpop.f32.mrb[0].mxu0
        %v2797 = vadd.f32 0.0, %v2796
        %v2798 = vpop.f32.mrb[0].mxu0
        %v2799 = vpop.f32.mrb[0].mxu0
        %v2800 = vadd.f32 0.0, %v2799
        %v2801 = vpop.f32.mrb[0].mxu0
        %2802 = vmatprep.mubr.bf16.mxu0 0
        %2803 = vmatmul.mubr.bf16.gmra.mrb[0].mxu0 %v1429
        %v2804 = vpop.f32.mrb[0].mxu0
        %v2805 = vadd.f32 0.0, %v2804
        %v2806 = vpop.f32.mrb[0].mxu0
        %v2807 = vpop.f32.mrb[0].mxu0
        %v2808 = vadd.f32 0.0, %v2807
        %v2809 = vpop.f32.mrb[0].mxu0
        %2810 = vmatprep.mubr.bf16.mxu0 0
        %2811 = vmatmul.mubr.bf16.gmra.mrb[0].mxu0 %v1432
        %v2812 = vpop.f32.mrb[0].mxu0
        %v2813 = vadd.f32 0.0, %v2812
        %v2814 = vpop.f32.mrb[0].mxu0
        %v2815 = vpop.f32.mrb[0].mxu0
        %v2816 = vadd.f32 0.0, %v2815
        %v2817 = vpop.f32.mrb[0].mxu0
        %2818 = vmatprep.mubr.bf16.mxu0 0
        %2819 = vmatmul.mubr.bf16.gmra.mrb[0].mxu0 %v1435
        %v2820 = vpop.f32.mrb[0].mxu0
        %v2821 = vadd.f32 0.0, %v2820
        %v2822 = vpop.f32.mrb[0].mxu0
        %v2823 = vpop.f32.mrb[0].mxu0
        %v2824 = vadd.f32 0.0, %v2823
        %v2825 = vpop.f32.mrb[0].mxu0
        %2826 = vmatprep.mubr.bf16.mxu0 0
        %2827 = vmatmul.mubr.bf16.gmra.mrb[0].mxu0 %v1438
        %v2828 = vpop.f32.mrb[0].mxu0
        %v2829 = vadd.f32 0.0, %v2828
        %v2830 = vpop.f32.mrb[0].mxu0
        %v2831 = vpop.f32.mrb[0].mxu0
        %v2832 = vadd.f32 0.0, %v2831
        %v2833 = vpop.f32.mrb[0].mxu0
        %2834 = vmatprep.mubr.bf16.mxu0 0
        %2835 = vmatmul.mubr.bf16.gmra.mrb[0].mxu0 %v1441
        %v2836 = vpop.f32.mrb[0].mxu0
        %v2837 = vadd.f32 0.0, %v2836
        %v2838 = vpop.f32.mrb[0].mxu0
        %v2839 = vpop.f32.mrb[0].mxu0
        %v2840 = vadd.f32 0.0, %v2839
        %v2841 = vpop.f32.mrb[0].mxu0
        %2842 = vmatprep.mubr.bf16.mxu0 0
        %2843 = vmatmul.mubr.bf16.gmra.mrb[0].mxu0 %v1444
        %v2844 = vpop.f32.mrb[0].mxu0
        %v2845 = vadd.f32 0.0, %v2844
        %v2846 = vpop.f32.mrb[0].mxu0
        %v2847 = vpop.f32.mrb[0].mxu0
        %v2848 = vadd.f32 0.0, %v2847
        %v2849 = vpop.f32.mrb[0].mxu0
        %2850 = vmatprep.mubr.bf16.mxu0 0
        %2851 = vmatmul.mubr.bf16.gmra.mrb[0].mxu0 %v1447
        %v2852 = vpop.f32.mrb[0].mxu0
        %v2853 = vadd.f32 0.0, %v2852
        %v2854 = vpop.f32.mrb[0].mxu0
        %v2855 = vpop.f32.mrb[0].mxu0
        %v2856 = vadd.f32 0.0, %v2855
        %v2857 = vpop.f32.mrb[0].mxu0
        %2858 = vmatprep.mubr.bf16.mxu0 0
        %2859 = vmatmul.mubr.bf16.gmra.mrb[0].mxu0 %v1450
        %v2860 = vpop.f32.mrb[0].mxu0
        %v2861 = vadd.f32 0.0, %v2860
        %v2862 = vpop.f32.mrb[0].mxu0
        %v2863 = vpop.f32.mrb[0].mxu0
        %v2864 = vadd.f32 0.0, %v2863
        %v2865 = vpop.f32.mrb[0].mxu0
        %2866 = vmatprep.mubr.bf16.mxu0 0
        %2867 = vmatmul.mubr.bf16.gmra.mrb[0].mxu0 %v1453
        %v2868 = vpop.f32.mrb[0].mxu0
        %v2869 = vadd.f32 0.0, %v2868
        %v2870 = vpop.f32.mrb[0].mxu0
        %v2871 = vpop.f32.mrb[0].mxu0
        %v2872 = vadd.f32 0.0, %v2871
        %v2873 = vpop.f32.mrb[0].mxu0
        %2874 = vmatprep.mubr.bf16.mxu0 0
        %2875 = vmatmul.mubr.bf16.gmra.mrb[0].mxu0 %v1456
        %v2876 = vpop.f32.mrb[0].mxu0
        %v2877 = vadd.f32 0.0, %v2876
        %v2878 = vpop.f32.mrb[0].mxu0
        %v2879 = vpop.f32.mrb[0].mxu0
        %v2880 = vadd.f32 0.0, %v2879
        %v2881 = vpop.f32.mrb[0].mxu0
        %2882 = vmatprep.mubr.bf16.mxu0 0
        %2883 = vmatmul.mubr.bf16.gmra.mrb[0].mxu0 %v1459
        %v2884 = vpop.f32.mrb[0].mxu0
        %v2885 = vadd.f32 0.0, %v2884
        %v2886 = vpop.f32.mrb[0].mxu0
        %v2887 = vpop.f32.mrb[0].mxu0
        %v2888 = vadd.f32 0.0, %v2887
        %v2889 = vpop.f32.mrb[0].mxu0
        %2890 = vmatprep.mubr.bf16.mxu0 0
        %2891 = vmatmul.mubr.bf16.gmra.mrb[0].mxu0 %v1462
        %v2892 = vpop.f32.mrb[0].mxu0
        %v2893 = vadd.f32 0.0, %v2892
        %v2894 = vpop.f32.mrb[0].mxu0
        %v2895 = vpop.f32.mrb[0].mxu0
        %v2896 = vadd.f32 0.0, %v2895
        %v2897 = vpop.f32.mrb[0].mxu0
        %2898 = vmatprep.mubr.bf16.mxu0 0
        %2899 = vmatmul.mubr.bf16.gmra.mrb[0].mxu0 %v1465
        %v2900 = vpop.f32.mrb[0].mxu0
        %v2901 = vadd.f32 0.0, %v2900
        %v2902 = vpop.f32.mrb[0].mxu0
        %v2903 = vpop.f32.mrb[0].mxu0
        %v2904 = vadd.f32 0.0, %v2903
        %v2905 = vpop.f32.mrb[0].mxu0
        %2906 = vmatprep.mubr.bf16.mxu0 0
        %2907 = vmatmul.mubr.bf16.gmra.mrb[0].mxu0 %v2111
        %v2908 = vpop.f32.mrb[0].mxu0
        %v2909 = vadd.f32 0.0, %v2908
        %v2910 = vpop.f32.mrb[0].mxu0
        %v2911 = vpop.f32.mrb[0].mxu0
        %v2912 = vadd.f32 0.0, %v2911
        %v2913 = vpop.f32.mrb[0].mxu0
        %2914 = vmatprep.mubr.bf16.mxu0 0
        %2915 = vmatmul.mubr.bf16.gmra.mrb[0].mxu0 %v2757
        %v2916 = vpop.f32.mrb[0].mxu0
        %v2917 = vadd.f32 0.0, %v2916
        %v2918 = vpop.f32.mrb[0].mxu0
        %v2919 = vpop.f32.mrb[0].mxu0
        %v2920 = vadd.f32 0.0, %v2919
        %v2921 = vpop.f32.mrb[0].mxu0
        %2922 = vdwg.mxu0
        %v2923 = vadd.f32 %v2711, %v2797
        %v2924 = vadd.f32 %v2712, %v2800
        %v2925 = vadd.f32 %v2713, %v2805
        %v2926 = vadd.f32 %v2714, %v2808
        %v2927 = vadd.f32 %v2715, %v2813
        %v2928 = vadd.f32 %v2716, %v2816
        %v2929 = vadd.f32 %v2717, %v2821
        %v2930 = vadd.f32 %v2718, %v2824
        %v2931 = vadd.f32 %v2719, %v2829
        %v2932 = vadd.f32 %v2720, %v2832
        %v2933 = vadd.f32 %v2721, %v2837
        %v2934 = vadd.f32 %v2722, %v2840
        %v2935 = vadd.f32 %v2723, %v2845
        %v2936 = vadd.f32 %v2724, %v2848
        %v2937 = vadd.f32 %v2725, %v2853
        %v2938 = vadd.f32 %v2726, %v2856
        %v2939 = vadd.f32 %v2727, %v2861
        %v2940 = vadd.f32 %v2728, %v2864
        %v2941 = vadd.f32 %v2729, %v2869
        %v2942 = vadd.f32 %v2730, %v2872
        %v2943 = vadd.f32 %v2731, %v2877
        %v2944 = vadd.f32 %v2732, %v2880
        %v2945 = vadd.f32 %v2733, %v2885
        %v2946 = vadd.f32 %v2734, %v2888
        %v2947 = vadd.f32 %v2735, %v2893
        %v2948 = vadd.f32 %v2736, %v2896
        %v2949 = vadd.f32 %v2737, %v2901
        %v2950 = vadd.f32 %v2738, %v2904
        %v2951 = vadd.f32 %v2739, %v2909
        %v2952 = vadd.f32 %v2740, %v2912
        %v2953 = vadd.f32 %v2741, %v2917
        %v2954 = vadd.f32 %v2742, %v2920
        %v2955 = vld [vmem:[%s2] sm:$0x1]
        %v2957 = vlaneseq
        %v2958 = vshrl.u32 %v2957, 7
        %v2959 = vsub.s32 0, %v2958
        %v2960 = vrot.slane %v2955, %v2959
        %v2962 = vadd.f32 %v2923, %v2960
        %v2963 = vadd.f32 %v2924, %v2960
        %v2964 = vadd.f32 %v2925, %v2960
        %v2965 = vadd.f32 %v2926, %v2960
        %v2966 = vadd.f32 %v2927, %v2960
        %v2967 = vadd.f32 %v2928, %v2960
        %v2968 = vadd.f32 %v2929, %v2960
        %v2969 = vadd.f32 %v2930, %v2960
        %v2970 = vadd.f32 %v2931, %v2960
        %v2971 = vadd.f32 %v2932, %v2960
        %v2972 = vadd.f32 %v2933, %v2960
        %v2973 = vadd.f32 %v2934, %v2960
        %v2974 = vadd.f32 %v2935, %v2960
        %v2975 = vadd.f32 %v2936, %v2960
        %v2976 = vadd.f32 %v2937, %v2960
        %v2977 = vadd.f32 %v2938, %v2960
        %v2978 = vadd.f32 %v2939, %v2960
        %v2979 = vadd.f32 %v2940, %v2960
        %v2980 = vadd.f32 %v2941, %v2960
        %v2981 = vadd.f32 %v2942, %v2960
        %v2982 = vadd.f32 %v2943, %v2960
        %v2983 = vadd.f32 %v2944, %v2960
        %v2984 = vadd.f32 %v2945, %v2960
        %v2985 = vadd.f32 %v2946, %v2960
        %v2986 = vadd.f32 %v2947, %v2960
        %v2987 = vadd.f32 %v2948, %v2960
        %v2988 = vadd.f32 %v2949, %v2960
        %v2989 = vadd.f32 %v2950, %v2960
        %v2990 = vadd.f32 %v2951, %v2960
        %v2991 = vadd.f32 %v2952, %v2960
        %v2992 = vadd.f32 %v2953, %v2960
        %v2993 = vadd.f32 %v2954, %v2960
        %2994 = vst [vmem:[%s221] sm:$0xff] %v2962
        %2995 = vst [vmem:[%s221 + $0x8] sm:$0xff] %v2963
        %2996 = vst [vmem:[%s221 + $0x10] sm:$0xff] %v2964
        %2997 = vst [vmem:[%s221 + $0x18] sm:$0xff] %v2965
        %2998 = vst [vmem:[%s221 + $0x20] sm:$0xff] %v2966
        %2999 = vst [vmem:[%s221 + $0x28] sm:$0xff] %v2967
        %3000 = vst [vmem:[%s221 + $0x30] sm:$0xff] %v2968
        %3001 = vst [vmem:[%s221 + $0x38] sm:$0xff] %v2969
        %3002 = vst [vmem:[%s221 + $0x40] sm:$0xff] %v2970
        %3003 = vst [vmem:[%s221 + $0x48] sm:$0xff] %v2971
        %3004 = vst [vmem:[%s221 + $0x50] sm:$0xff] %v2972
        %3005 = vst [vmem:[%s221 + $0x58] sm:$0xff] %v2973
        %3006 = vst [vmem:[%s221 + $0x60] sm:$0xff] %v2974
        %3007 = vst [vmem:[%s221 + $0x68] sm:$0xff] %v2975
        %3008 = vst [vmem:[%s221 + $0x70] sm:$0xff] %v2976
        %3009 = vst [vmem:[%s221 + $0x78] sm:$0xff] %v2977
        %3010 = vst [vmem:[%s221 + $0x80] sm:$0xff] %v2978
        %3011 = vst [vmem:[%s221 + $0x88] sm:$0xff] %v2979
        %3012 = vst [vmem:[%s221 + $0x90] sm:$0xff] %v2980
        %3013 = vst [vmem:[%s221 + $0x98] sm:$0xff] %v2981
        %3014 = vst [vmem:[%s221 + $0xa0] sm:$0xff] %v2982
        %3015 = vst [vmem:[%s221 + $0xa8] sm:$0xff] %v2983
        %3016 = vst [vmem:[%s221 + $0xb0] sm:$0xff] %v2984
        %3017 = vst [vmem:[%s221 + $0xb8] sm:$0xff] %v2985
        %3018 = vst [vmem:[%s221 + $0xc0] sm:$0xff] %v2986
        %3019 = vst [vmem:[%s221 + $0xc8] sm:$0xff] %v2987
        %3020 = vst [vmem:[%s221 + $0xd0] sm:$0xff] %v2988
        %3021 = vst [vmem:[%s221 + $0xd8] sm:$0xff] %v2989
        %3022 = vst [vmem:[%s221 + $0xe0] sm:$0xff] %v2990
        %3023 = vst [vmem:[%s221 + $0xe8] sm:$0xff] %v2991
        %3024 = vst [vmem:[%s221 + $0xf0] sm:$0xff] %v2992
        %3025 = vst [vmem:[%s221 + $0xf8] sm:$0xff] %v2993
        %v3026 = vadd.f32 %v2962, %v2963
        %v3027 = vadd.f32 %v3026, %v2964
        %v3028 = vadd.f32 %v3027, %v2965
        %v3029 = vadd.f32 %v3028, %v2966
        %v3030 = vadd.f32 %v3029, %v2967
        %v3031 = vadd.f32 %v3030, %v2968
        %v3032 = vadd.f32 %v3031, %v2969
        %v3033 = vadd.f32 %v3032, %v2970
        %v3034 = vadd.f32 %v3033, %v2971
        %v3035 = vadd.f32 %v3034, %v2972
        %v3036 = vadd.f32 %v3035, %v2973
        %v3037 = vadd.f32 %v3036, %v2974
        %v3038 = vadd.f32 %v3037, %v2975
        %v3039 = vadd.f32 %v3038, %v2976
        %v3040 = vadd.f32 %v3039, %v2977
        %v3041 = vadd.f32 %v3040, %v2978
        %v3042 = vadd.f32 %v3041, %v2979
        %v3043 = vadd.f32 %v3042, %v2980
        %v3044 = vadd.f32 %v3043, %v2981
        %v3045 = vadd.f32 %v3044, %v2982
        %v3046 = vadd.f32 %v3045, %v2983
        %v3047 = vadd.f32 %v3046, %v2984
        %v3048 = vadd.f32 %v3047, %v2985
        %v3049 = vadd.f32 %v3048, %v2986
        %v3050 = vadd.f32 %v3049, %v2987
        %v3051 = vadd.f32 %v3050, %v2988
        %v3052 = vadd.f32 %v3051, %v2989
        %v3053 = vadd.f32 %v3052, %v2990
        %v3054 = vadd.f32 %v3053, %v2991
        %v3055 = vadd.f32 %v3054, %v2992
        %v3056 = vadd.f32 %v3055, %v2993
        %v3057 = vrot.slane %v3056, 4
        %v3058 = vadd.f32 %v3056, %v3057
        %v3059 = vrot.slane %v3058, 2
        %v3060 = vadd.f32 %v3058, %v3059
        %v3061 = vrot.slane %v3060, 1
        %v3062 = vadd.f32 %v3060, %v3061
        %3063 = vst [vmem:[%s227] sm:$0x1] %v3062
        %v3064 = vmul.f32 %v2962, %v2962
        %v3065 = vmul.f32 %v2963, %v2963
        %v3066 = vmul.f32 %v2964, %v2964
        %v3067 = vmul.f32 %v2965, %v2965
        %v3068 = vmul.f32 %v2966, %v2966
        %v3069 = vmul.f32 %v2967, %v2967
        %v3070 = vmul.f32 %v2968, %v2968
        %v3071 = vmul.f32 %v2969, %v2969
        %v3072 = vmul.f32 %v2970, %v2970
        %v3073 = vmul.f32 %v2971, %v2971
        %v3074 = vmul.f32 %v2972, %v2972
        %v3075 = vmul.f32 %v2973, %v2973
        %v3076 = vmul.f32 %v2974, %v2974
        %v3077 = vmul.f32 %v2975, %v2975
        %v3078 = vmul.f32 %v2976, %v2976
        %v3079 = vmul.f32 %v2977, %v2977
        %v3080 = vmul.f32 %v2978, %v2978
        %v3081 = vmul.f32 %v2979, %v2979
        %v3082 = vmul.f32 %v2980, %v2980
        %v3083 = vmul.f32 %v2981, %v2981
        %v3084 = vmul.f32 %v2982, %v2982
        %v3085 = vmul.f32 %v2983, %v2983
        %v3086 = vmul.f32 %v2984, %v2984
        %v3087 = vmul.f32 %v2985, %v2985
        %v3088 = vmul.f32 %v2986, %v2986
        %v3089 = vmul.f32 %v2987, %v2987
        %v3090 = vmul.f32 %v2988, %v2988
        %v3091 = vmul.f32 %v2989, %v2989
        %v3092 = vmul.f32 %v2990, %v2990
        %v3093 = vmul.f32 %v2991, %v2991
        %v3094 = vmul.f32 %v2992, %v2992
        %v3095 = vmul.f32 %v2993, %v2993
        %v3096 = vadd.f32 %v3064, %v3065
        %v3097 = vadd.f32 %v3096, %v3066
        %v3098 = vadd.f32 %v3097, %v3067
        %v3099 = vadd.f32 %v3098, %v3068
        %v3100 = vadd.f32 %v3099, %v3069
        %v3101 = vadd.f32 %v3100, %v3070
        %v3102 = vadd.f32 %v3101, %v3071
        %v3103 = vadd.f32 %v3102, %v3072
        %v3104 = vadd.f32 %v3103, %v3073
        %v3105 = vadd.f32 %v3104, %v3074
        %v3106 = vadd.f32 %v3105, %v3075
        %v3107 = vadd.f32 %v3106, %v3076
        %v3108 = vadd.f32 %v3107, %v3077
        %v3109 = vadd.f32 %v3108, %v3078
        %v3110 = vadd.f32 %v3109, %v3079
        %v3111 = vadd.f32 %v3110, %v3080
        %v3112 = vadd.f32 %v3111, %v3081
        %v3113 = vadd.f32 %v3112, %v3082
        %v3114 = vadd.f32 %v3113, %v3083
        %v3115 = vadd.f32 %v3114, %v3084
        %v3116 = vadd.f32 %v3115, %v3085
        %v3117 = vadd.f32 %v3116, %v3086
        %v3118 = vadd.f32 %v3117, %v3087
        %v3119 = vadd.f32 %v3118, %v3088
        %v3120 = vadd.f32 %v3119, %v3089
        %v3121 = vadd.f32 %v3120, %v3090
        %v3122 = vadd.f32 %v3121, %v3091
        %v3123 = vadd.f32 %v3122, %v3092
        %v3124 = vadd.f32 %v3123, %v3093
        %v3125 = vadd.f32 %v3124, %v3094
        %v3126 = vadd.f32 %v3125, %v3095
        %v3127 = vrot.slane %v3126, 4
        %v3128 = vadd.f32 %v3126, %v3127
        %v3129 = vrot.slane %v3128, 2
        %v3130 = vadd.f32 %v3128, %v3129
        %v3131 = vrot.slane %v3130, 1
        %v3132 = vadd.f32 %v3130, %v3131
        %3133 = vst [vmem:[%s233] sm:$0x1] %v3132
        %s3134 = sand.u32 %s99, 1
        %s3135 = scalar_lea.sflag [#allocation3], %s3134
        %s3136 = sand.u32 %s99, 1
        %s3137 = smul.addr %s3136, 256
        %s3138 = scalar_lea.vmem [#allocation2], %s3137
        %s3139 = sand.u32 %s23, 1
        %s3140 = scalar_lea.sflag [#allocation5], %s3139
        %s3141 = sand.u32 %s125, 1
        %s3142 = scalar_lea.vmem [#allocation4], %s3141
        %s3143 = sand.u32 %s23, 1
        %s3144 = scalar_lea.sflag [#allocation5], %s3143
        %s3145 = sand.u32 %s151, 1
        %s3146 = scalar_lea.vmem [#allocation6], %s3145
        // Predicated region
        $region33: #{tpu_custom_call.1} parent=31 // pred_check
          %p3147 = pneg %p109
        $region34: #{tpu_custom_call.1} parent=31 // pred_check_branch
          %3149 = sbr.rel (%p3147) target = $region36
        $region35: #{tpu_custom_call.1} parent=31 // pred_region
          %s3151 = ssub.s32 4096, 4096
          %3152 = vsyncadd %s3135, %s3151
          %s3153 = smul.addr %s23, 32
          %s3154 = smul.addr %s3153, 128
          %s3155 = scalar_lea.hbm %s3, %s3154
          %s3156 = sshll.u32 %s3138, 4
          %s3157 = int_to_ptr.vmem [resolvable:$true] %s3156
          %3162 = dma.vmem_to_hbm [thread:$0]  %s3157, 4096, %s3155, %s3135, 128, 128, 8
        $region36: #{tpu_custom_call.1} parent=31 // pred_fallthru
          _
        // Predicated region
        $region37: #{tpu_custom_call.1} parent=31 // pred_check
          %p3163 = pneg %p135
        $region38: #{tpu_custom_call.1} parent=31 // pred_check_branch
          %3165 = sbr.rel (%p3163) target = $region40
        $region39: #{tpu_custom_call.1} parent=31 // pred_region
          %s3167 = ssub.s32 16, 16
          %3168 = vsyncadd %s3140, %s3167
          %s3169 = smul.addr %s23, 16
          %s3170 = scalar_lea.hbm %s4, %s3169
          %s3172 = sshll.u32 %s3142, 4
          %s3173 = int_to_ptr.vmem [resolvable:$true] %s3172
          %3175 = dma.vmem_to_hbm [thread:$0]  %s3173, 16, %s3170, %s3140
        $region40: #{tpu_custom_call.1} parent=31 // pred_fallthru
          _
        // Predicated region
        $region41: #{tpu_custom_call.1} parent=31 // pred_check
          %p3176 = pneg %p161
        $region42: #{tpu_custom_call.1} parent=31 // pred_check_branch
          %3178 = sbr.rel (%p3176) target = $region44
        $region43: #{tpu_custom_call.1} parent=31 // pred_region
          %s3180 = ssub.s32 16, 16
          %3181 = vsyncadd %s3144, %s3180
          %s3182 = smul.addr %s23, 16
          %s3183 = scalar_lea.hbm %s5, %s3182
          %s3185 = sshll.u32 %s3146, 4
          %s3186 = int_to_ptr.vmem [resolvable:$true] %s3185
          %3188 = dma.vmem_to_hbm [thread:$0]  %s3186, 16, %s3183, %s3144
        $region44: #{tpu_custom_call.1} parent=31 // pred_fallthru
          _
      $region32: #{tpu_custom_call.1} parent=5 // pred_fallthru
        _
      %p3189 = scmp.le.s32.totalorder 2, %s18
      // Predicated region
      $region45: #{tpu_custom_call.1} parent=5 // pred_check
        %p3190 = pneg %p3189
      $region46: #{tpu_custom_call.1} parent=5 // pred_check_branch
        %3192 = sbr.rel (%p3190) target = $region48
      $region47: #{tpu_custom_call.1} parent=5 // pred_region
        %s3193 = ssub.s32 %s18, 2
        // Predicated region
        $region49: #{tpu_custom_call.1} parent=47 // pred_check
          %p3194 = pneg %p115
        $region50: #{tpu_custom_call.1} parent=47 // pred_check_branch
          %3196 = sbr.rel (%p3194) target = $region52
        $region51: #{tpu_custom_call.1} parent=47 // pred_region
          %s3197 = sand.u32 %s100, 1
          %s3198 = scalar_lea.sflag [#allocation3], %s3197
          %s3199 = sand.u32 %s100, 1
          %s3200 = smul.addr %s3199, 256
          %s3201 = scalar_lea.vmem [#allocation2], %s3200
          %3202 = dma.done %s3198, 4096
        $region52: #{tpu_custom_call.1} parent=47 // pred_fallthru
          _
        // Predicated region
        $region53: #{tpu_custom_call.1} parent=47 // pred_check
          %p3203 = pneg %p141
        $region54: #{tpu_custom_call.1} parent=47 // pred_check_branch
          %3205 = sbr.rel (%p3203) target = $region56
        $region55: #{tpu_custom_call.1} parent=47 // pred_region
          %s3206 = sand.u32 %s24, 1
          %s3207 = scalar_lea.sflag [#allocation5], %s3206
          %s3208 = sand.u32 %s126, 1
          %s3209 = scalar_lea.vmem [#allocation4], %s3208
          %3210 = dma.done %s3207, 16
        $region56: #{tpu_custom_call.1} parent=47 // pred_fallthru
          _
        // Predicated region
        $region57: #{tpu_custom_call.1} parent=47 // pred_check
          %p3211 = pneg %p167
        $region58: #{tpu_custom_call.1} parent=47 // pred_check_branch
          %3213 = sbr.rel (%p3211) target = $region60
        $region59: #{tpu_custom_call.1} parent=47 // pred_region
          %s3214 = sand.u32 %s24, 1
          %s3215 = scalar_lea.sflag [#allocation5], %s3214
          %s3216 = sand.u32 %s152, 1
          %s3217 = scalar_lea.vmem [#allocation6], %s3216
          %3218 = dma.done %s3215, 16
        $region60: #{tpu_custom_call.1} parent=47 // pred_fallthru
          _
      $region48: #{tpu_custom_call.1} parent=5 // pred_fallthru
        _
    $region6: #{tpu_custom_call.1} parent=1 // loop_footer
      %s22 = sadd.s32 1, %s18
    $region7: #{tpu_custom_call.1} parent=1 // loop_footer_branch
      %17 = sbr.rel target = $region3
    $region8: #{tpu_custom_call.1} parent=1 // loop_exit
      _
    %3219 = vsyncpa [#allocation3], 1
    %s3220 = scalar_lea.sflag [#allocation3], 1
    %3221 = vsyncpa %s3220, 1
    %3222 = vsyncpa [#allocation5], 1
    %s3223 = scalar_lea.sflag [#allocation5], 1
    %3224 = vsyncpa %s3223, 1

</llo_original>
